<compile_context>
chip_gen: v7x
topology: tpu7x:2x2x1
jax: 0.10.0
libtpu: 0.0.40
codegen_flags: <defaults>
</compile_context>

<pallas_src>
import functools

import jax
import jax.numpy as jnp
from jax.experimental import pallas as pl
from jax.experimental.pallas import tpu as pltpu


F_PAD = 128    # lane-padded feature width used for every layer (4 / 32 / 16 -> 128)
N_ALIGN = 512  # padded node count is a multiple of this (keeps 256/512 tiles valid)


def _round_up(x, m):
    return ((x + m - 1) // m) * m


def _largest_divisor(n, candidates):
    for c in candidates:
        if n % c == 0:
            return c
    return n


def _vmem_capacity_bytes():
    """Physical VMEM of the local TPU; conservative 64 MiB (v7x-sized) fallback."""
    try:
        return int(pltpu.get_tpu_info().vmem_capacity_bytes)
    except Exception:
        return 64 << 20


# --------------------------------------------------------------------------------------
# Fused 3-layer kernel: Ahat resident in VMEM, loaded from HBM exactly once.
#   grid = (layer, row_tile); per step: acc = Ahat[rows] @ H_{l-1}; out = acc @ W_l + b_l
# --------------------------------------------------------------------------------------
def _gcn3_fused_kernel(adj_hbm, x_ref, w_ref, b_ref, out_ref,
                       adj_vmem, h1_ref, h2_ref, acc_ref, copy_sem, *, tm):
    layer = pl.program_id(0)
    r = pl.program_id(1)

    # Load the whole normalized adjacency HBM -> VMEM exactly once; every layer and
    # every row tile reuses it afterwards.
    @pl.when(jnp.logical_and(layer == 0, r == 0))
    def _():
        cp = pltpu.make_async_copy(adj_hbm, adj_vmem, copy_sem)
        cp.start()
        cp.wait()

    rows = pl.ds(pl.multiple_of(r * tm, 128), tm)
    adj_rows = adj_vmem[rows, :]                            # (tm, n_pad) bf16

    # Aggregation Ahat[rows] @ H_{layer-1}; the source depends on the layer index.
    @pl.when(layer == 0)
    def _():
        acc_ref[...] = jnp.dot(adj_rows, x_ref[...], preferred_element_type=jnp.float32)

    @pl.when(layer == 1)
    def _():
        acc_ref[...] = jnp.dot(adj_rows, h1_ref[...], preferred_element_type=jnp.float32)

    @pl.when(layer == 2)
    def _():
        acc_ref[...] = jnp.dot(adj_rows, h2_ref[...], preferred_element_type=jnp.float32)

    # Per-layer epilogue: bf16 feeds, f32 accumulation (plenty for 32 useful columns).
    res = jnp.dot(acc_ref[...].astype(jnp.bfloat16), w_ref[...],
                  preferred_element_type=jnp.float32) + b_ref[...]

    @pl.when(layer == 0)
    def _():
        h1_ref[rows, :] = jnp.maximum(res, 0.0).astype(h1_ref.dtype)

    @pl.when(layer == 1)
    def _():
        h2_ref[rows, :] = jnp.maximum(res, 0.0).astype(h2_ref.dtype)

    @pl.when(layer == 2)
    def _():
        out_ref[rows, :] = res.astype(out_ref.dtype)        # final layer: no ReLU, f32


def _fused_vmem_bytes(n_pad, tm):
    return (n_pad * n_pad * 2            # resident Ahat scratch (bf16)
            + 2 * n_pad * F_PAD * 2      # h1 + h2 activation scratch (bf16)
            + 2 * n_pad * F_PAD * 2      # X input (double-buffered bf16)
            + 2 * n_pad * F_PAD * 4      # resident output (double-buffered f32)
            + tm * F_PAD * 4             # f32 aggregation scratch
            + 4 * F_PAD * F_PAD * 2      # W blocks
            + 4 * 8 * F_PAD * 4)         # bias blocks (sublane padded)


def _gcn3_fused(adj_bf16, x_bf16, w_all_bf16, b_all_f32):
    n_pad = adj_bf16.shape[0]
    tm = 256 if n_pad % 256 == 0 else 128
    grid = (3, n_pad // tm)

    cap = _vmem_capacity_bytes()
    vmem_limit = int(min(max(_fused_vmem_bytes(n_pad, tm) + (8 << 20), 32 << 20),
                         cap - (2 << 20)))

    cost = pl.CostEstimate(
        flops=int(3 * (2 * n_pad * n_pad * F_PAD + 2 * n_pad * F_PAD * F_PAD)),
        transcendentals=0,
        bytes_accessed=int(n_pad * n_pad * 2            # Ahat read exactly once
                           + n_pad * F_PAD * 2          # X
                           + n_pad * F_PAD * 4          # output
                           + 3 * F_PAD * F_PAD * 2),    # weights
    )

    kernel = functools.partial(_gcn3_fused_kernel, tm=tm)
    return pl.pallas_call(
        kernel,
        out_shape=jax.ShapeDtypeStruct((n_pad, F_PAD), jnp.float32),
        grid_spec=pltpu.PrefetchScalarGridSpec(
            num_scalar_prefetch=0,
            grid=grid,
            in_specs=[
                pl.BlockSpec(memory_space=pl.ANY),                           # Ahat in HBM
                pl.BlockSpec((n_pad, F_PAD), lambda l, r: (0, 0)),           # X, resident
                pl.BlockSpec((None, F_PAD, F_PAD), lambda l, r: (l, 0, 0)),  # W_l
                pl.BlockSpec((None, 1, F_PAD), lambda l, r: (l, 0, 0)),      # b_l
            ],
            out_specs=pl.BlockSpec((n_pad, F_PAD), lambda l, r: (0, 0)),     # resident out
            scratch_shapes=[
                pltpu.VMEM((n_pad, n_pad), jnp.bfloat16),   # resident Ahat
                pltpu.VMEM((n_pad, F_PAD), jnp.bfloat16),   # layer-1 activations
                pltpu.VMEM((n_pad, F_PAD), jnp.bfloat16),   # layer-2 activations
                pltpu.VMEM((tm, F_PAD), jnp.float32),       # aggregation accumulator
                pltpu.SemaphoreType.DMA,                    # adjacency copy semaphore
            ],
        ),
        compiler_params=pltpu.CompilerParams(
            # The layer axis carries a hard dependency (layer l+1 reads ALL rows written
            # by layer l), so both axes stay sequential on a single core.
            dimension_semantics=("arbitrary", "arbitrary"),
            vmem_limit_bytes=vmem_limit,
        ),
        cost_estimate=cost,
    )(adj_bf16, x_bf16, w_all_bf16, b_all_f32)


# --------------------------------------------------------------------------------------
# Streaming per-layer kernel (large graphs): Ahat tiles stream, H resident in VMEM.
# --------------------------------------------------------------------------------------
def _gcn_layer_kernel(adj_ref, h_ref, w_ref, b_ref, out_ref, acc_ref, *,
                      apply_relu, resident_h, tk):
    k = pl.program_id(1)

    @pl.when(k == 0)
    def _():
        acc_ref[...] = jnp.zeros_like(acc_ref)

    if resident_h:
        # H is fetched once (constant-index BlockSpec); slice the K-tile in-kernel.
        h_tile = h_ref[pl.ds(pl.multiple_of(k * tk, 128), tk), :]
    else:
        h_tile = h_ref[...]
    acc_ref[...] += jnp.dot(adj_ref[...], h_tile, preferred_element_type=jnp.float32)

    @pl.when(k == pl.num_programs(1) - 1)
    def _():
        # (Ahat @ H) @ W + b  ==  Ahat @ (H @ W) + b ; bf16 feeds, f32 accumulation.
        res = jnp.dot(acc_ref[...].astype(jnp.bfloat16), w_ref[...],
                      preferred_element_type=jnp.float32)
        res = res + b_ref[...]
        if apply_relu:
            res = jnp.maximum(res, 0.0)
        out_ref[...] = res.astype(out_ref.dtype)


def _gcn_layer(adj_bf16, h_bf16, w_bf16, b_f32, *, apply_relu, out_dtype):
    n_pad = adj_bf16.shape[0]
    if n_pad % N_ALIGN == 0:
        tm = 256 if n_pad == N_ALIGN else 512   # grid[0] >= 2 keeps both v7x TCs busy
        tk = _largest_divisor(n_pad, (4096, 2048, 1024, 512))
    else:  # externally supplied Ahat with unusual padding
        tm = _largest_divisor(n_pad, (512, 256, 128))
        tk = _largest_divisor(n_pad, (4096, 2048, 1024, 512, 256, 128))
    grid = (n_pad // tm, n_pad // tk)

    # Keep the whole activation matrix resident in VMEM unless the graph is enormous
    # (it is only n_pad * 256 B), avoiding the H re-stream per adjacency row tile.
    resident_h = (2 * n_pad * F_PAD * 2) <= (8 << 20)

    out_bytes = 2 if out_dtype == jnp.bfloat16 else 4
    h_buf_bytes = (2 * n_pad * F_PAD * 2) if resident_h else (2 * tk * F_PAD * 2)
    vmem_bytes = (2 * tm * tk * 2               # Ahat tiles (double-buffered bf16)
                  + h_buf_bytes                 # H (resident or streamed tiles)
                  + 2 * F_PAD * F_PAD * 2       # W
                  + 2 * 8 * F_PAD * 4           # bias (sublane padded)
                  + 2 * tm * F_PAD * out_bytes  # output tiles
                  + tm * F_PAD * 4)             # accumulator scratch
    cap = _vmem_capacity_bytes()
    vmem_limit = int(min(max(vmem_bytes + (8 << 20), 32 << 20), cap - (2 << 20)))

    h_stream_bytes = (n_pad * F_PAD * 2) if resident_h else (grid[0] * n_pad * F_PAD * 2)
    cost = pl.CostEstimate(
        flops=int(2 * n_pad * n_pad * F_PAD + 2 * n_pad * F_PAD * F_PAD),
        transcendentals=0,
        bytes_accessed=int(n_pad * n_pad * 2 + h_stream_bytes
                           + n_pad * F_PAD * out_bytes + F_PAD * F_PAD * 2),
    )

    if resident_h:
        h_spec = pl.BlockSpec((n_pad, F_PAD), lambda i, k: (0, 0))
    else:
        h_spec = pl.BlockSpec((tk, F_PAD), lambda i, k: (k, 0))

    kernel = functools.partial(_gcn_layer_kernel, apply_relu=apply_relu,
                               resident_h=resident_h, tk=tk)
    return pl.pallas_call(
        kernel,
        out_shape=jax.ShapeDtypeStruct((n_pad, F_PAD), out_dtype),
        grid_spec=pltpu.PrefetchScalarGridSpec(
            num_scalar_prefetch=0,
            grid=grid,
            in_specs=[
                pl.BlockSpec((tm, tk), lambda i, k: (i, k)),        # Ahat tile (bf16)
                h_spec,                                             # H (bf16)
                pl.BlockSpec((F_PAD, F_PAD), lambda i, k: (0, 0)),  # W (bf16, resident)
                pl.BlockSpec((1, F_PAD), lambda i, k: (0, 0)),      # bias (f32, resident)
            ],
            out_specs=pl.BlockSpec((tm, F_PAD), lambda i, k: (i, 0)),
            scratch_shapes=[pltpu.VMEM((tm, F_PAD), jnp.float32)],
        ),
        compiler_params=pltpu.CompilerParams(
            dimension_semantics=("parallel", "arbitrary"),
            vmem_limit_bytes=vmem_limit,
        ),
        cost_estimate=cost,
    )(adj_bf16, h_bf16, w_bf16, b_f32)


@jax.jit
def _gcn3_forward_stream(adj, x, w1, b1, w2, b2, w3, b3):
    h = _gcn_layer(adj, x, w1, b1, apply_relu=True, out_dtype=jnp.bfloat16)
    h = _gcn_layer(adj, h, w2, b2, apply_relu=True, out_dtype=jnp.bfloat16)
    return _gcn_layer(adj, h, w3, b3, apply_relu=False, out_dtype=jnp.float32)


@jax.jit
def _gcn3_forward_fused(adj, x, w_all, b_all):
    return _gcn3_fused(adj, x, w_all, b_all)


# --------------------------------------------------------------------------------------
# Plain-JAX glue: normalized adjacency (PyG GCNConv: Ahat = D^{-1/2} (A + I) D^{-1/2})
# --------------------------------------------------------------------------------------
def normalized_adjacency(edge_index, num_nodes):
    src = edge_index[0]
    dst = edge_index[1]
    adj = jnp.zeros((num_nodes, num_nodes), dtype=jnp.float32)
    adj = adj.at[dst, src].add(1.0)
    adj = adj + jnp.eye(num_nodes, dtype=jnp.float32)  # self loops
    deg = jnp.sum(adj, axis=1)
    deg_inv_sqrt = jnp.where(deg > 0, jax.lax.rsqrt(deg), 0.0)
    return deg_inv_sqrt[:, None] * adj * deg_inv_sqrt[None, :]


class ArithmeticCircuitGNNPallas:
    """JAX/Pallas re-implementation of ArithmeticCircuitGNN (3x GCNConv)."""

    def __init__(self, input_dim, hidden_dim, embedding_dim, key):
        assert max(input_dim, hidden_dim, embedding_dim) <= F_PAD
        self.input_dim = input_dim
        self.hidden_dim = hidden_dim
        self.embedding_dim = embedding_dim

        def glorot(k, fan_in, fan_out):
            limit = jnp.sqrt(6.0 / (fan_in + fan_out))
            return jax.random.uniform(k, (fan_in, fan_out), jnp.float32, -limit, limit)

        def pad_w(w):
            return jnp.zeros((F_PAD, F_PAD), jnp.float32).at[:w.shape[0], :w.shape[1]].set(w)

        def pad_b(b, width):
            return jnp.zeros((1, F_PAD), jnp.float32).at[:, :width].set(b)

        k1, k2, k3 = jax.random.split(key, 3)
        # Unpadded f32 params (reference math / export).
        self.w1 = glorot(k1, input_dim, hidden_dim)
        self.b1 = jnp.zeros((1, hidden_dim), jnp.float32)
        self.w2 = glorot(k2, hidden_dim, hidden_dim)
        self.b2 = jnp.zeros((1, hidden_dim), jnp.float32)
        self.w3 = glorot(k3, hidden_dim, embedding_dim)
        self.b3 = jnp.zeros((1, embedding_dim), jnp.float32)

        # Lane-padded kernel-side params: bf16 weights (MXU feed), f32 biases.
        self.w1_k = pad_w(self.w1).astype(jnp.bfloat16)
        self.w2_k = pad_w(self.w2).astype(jnp.bfloat16)
        self.w3_k = pad_w(self.w3).astype(jnp.bfloat16)
        self.b1_k = pad_b(self.b1, hidden_dim)
        self.b2_k = pad_b(self.b2, hidden_dim)
        self.b3_k = pad_b(self.b3, embedding_dim)

        # Stacked per-layer params for the fused 3-layer kernel.
        self.w_all = jnp.stack([self.w1_k, self.w2_k, self.w3_k])   # (3, 128, 128) bf16
        self.b_all = jnp.stack([self.b1_k, self.b2_k, self.b3_k])   # (3, 1, 128) f32

    def precompute_adjacency(self, edge_index, num_nodes):
        """Padded bf16 Ahat (multiple of 512 nodes); cache & reuse across forwards."""
        n_pad = max(_round_up(num_nodes, N_ALIGN), N_ALIGN)
        a = normalized_adjacency(edge_index, num_nodes)
        a_pad = jnp.zeros((n_pad, n_pad), jnp.float32).at[:num_nodes, :num_nodes].set(a)
        return a_pad.astype(jnp.bfloat16)

    def __call__(self, x, edge_index, adj_hat=None, use_fused=None):
        n = x.shape[0]
        if edge_index.size == 0:
            # Mirrors the torch module's early return for empty graphs.
            return jnp.zeros((n, self.embedding_dim), jnp.float32)
        if adj_hat is None:
            adj_hat = self.precompute_adjacency(edge_index, n)
        n_pad = adj_hat.shape[0]

        x_pad = jnp.zeros((n_pad, F_PAD), jnp.float32)
        x_pad = x_pad.at[:n, :x.shape[1]].set(x.astype(jnp.float32))
        x_pad = x_pad.astype(jnp.bfloat16)

        if use_fused is None:
            use_fused = (n_pad % 256 == 0 and
                         _fused_vmem_bytes(n_pad, 256) + (12 << 20) <= _vmem_capacity_bytes())

        if use_fused:
            out = _gcn3_forward_fused(adj_hat, x_pad, self.w_all, self.b_all)
        else:
            out = _gcn3_forward_stream(adj_hat, x_pad,
                                       self.w1_k, self.b1_k,
                                       self.w2_k, self.b2_k,
                                       self.w3_k, self.b3_k)
        return out[:n, :self.embedding_dim]


# --------------------------------------------------------------------------------------
# Reference + checks
# --------------------------------------------------------------------------------------
def _reference_gcn3(adj, x, w1, b1, w2, b2, w3, b3):
    h = jnp.maximum(adj @ (x @ w1) + b1, 0.0)
    h = jnp.maximum(adj @ (h @ w2) + b2, 0.0)
    return adj @ (h @ w3) + b3


def _check_close(out, ref, tol=6e-2):
    err = float(jnp.max(jnp.abs(out - ref)) / (jnp.max(jnp.abs(ref)) + 1e-6))
    assert err < tol, f"Pallas output mismatch vs reference: rel_err={err}"


if __name__ == "__main__":
    key = jax.random.PRNGKey(0)
    k_param, k_x, k_x2, k_e = jax.random.split(key, 4)

    input_dim, hidden_dim, embedding_dim = 4, 32, 16
    model = ArithmeticCircuitGNNPallas(input_dim, hidden_dim, embedding_dim, k_param)

    # --- tiny graph (module-consistent shapes), fused Ahat-resident path ---
    num_nodes = 8
    x = jax.random.normal(k_x, (num_nodes, input_dim), jnp.float32)
    edge_index = jnp.array(
        [[0, 1, 2, 3, 4, 5, 6, 7, 0, 2],
         [1, 2, 3, 4, 5, 6, 7, 0, 4, 6]], dtype=jnp.int32)

    out = jax.block_until_ready(model(x, edge_index))
    assert out.shape == (num_nodes, embedding_dim)
    adj = normalized_adjacency(edge_index, num_nodes)
    ref = _reference_gcn3(adj, x, model.w1, model.b1, model.w2, model.b2, model.w3, model.b3)
    _check_close(out, ref)

    # --- larger graph with precomputed/cached adjacency (fused path) ---
    n2 = 384
    x2 = jax.random.normal(k_x2, (n2, input_dim), jnp.float32)
    e2 = jax.random.randint(k_e, (2, 4 * n2), 0, n2, dtype=jnp.int32)
    adj_hat2 = model.precompute_adjacency(e2, n2)
    out2 = jax.block_until_ready(model(x2, e2, adj_hat=adj_hat2))
    assert out2.shape == (n2, embedding_dim)
    adj2 = normalized_adjacency(e2, n2)
    ref2 = _reference_gcn3(adj2, x2, model.w1, model.b1, model.w2, model.b2, model.w3, model.b3)
    _check_close(out2, ref2)

    # --- same graph through the streaming (per-layer, resident-H) path ---
    out2s = jax.block_until_ready(model(x2, e2, adj_hat=adj_hat2, use_fused=False))
    _check_close(out2s, ref2)

    # --- empty-edge early return (no kernel launch), as in the torch module ---
    empty_out = model(x, jnp.zeros((2, 0), jnp.int32))
    assert empty_out.shape == (num_nodes, embedding_dim) and not bool(jnp.any(empty_out))

    print("KERNEL_OK")
</pallas_src>

<mosaic_0001>
module attributes {stable_mosaic.version = 11 : i64} {
  func.func @_gcn3_fused_kernel(%arg0: i32, %arg1: i32, %arg2: memref<512x512xbf16, #tpu.memory_space<any>>, %arg3: memref<512x128xbf16, #tpu.memory_space<vmem>>, %arg4: memref<1x128x128xbf16, #tpu.memory_space<vmem>>, %arg5: memref<1x1x128xf32, #tpu.memory_space<vmem>>, %arg6: memref<512x128xf32, #tpu.memory_space<vmem>>, %arg7: memref<512x512xbf16, #tpu.memory_space<vmem>>, %arg8: memref<512x128xbf16, #tpu.memory_space<vmem>>, %arg9: memref<512x128xbf16, #tpu.memory_space<vmem>>, %arg10: memref<256x128xf32, #tpu.memory_space<vmem>>, %arg11: memref<!tpu.dma_semaphore, #tpu.memory_space<semaphore_mem>>) attributes {dimension_semantics = [#tpu.dimension_semantics<arbitrary>, #tpu.dimension_semantics<arbitrary>], iteration_bounds = array<i64: 3, 2>, scalar_prefetch = 0 : i64, scratch_operands = 5 : i64, tpu.core_type = #tpu.core_type<tc>, window_params = [{}, {pipeline_mode = #tpu.pipeline_mode<synchronous>, transform_indices = @transform_1, window_bounds = array<i64: 512, 128>}, {transform_indices = @transform_2, window_bounds = array<i64: 1, 128, 128>}, {transform_indices = @transform_3, window_bounds = array<i64: 1, 1, 128>}, {pipeline_mode = #tpu.pipeline_mode<synchronous>, transform_indices = @transform_4, window_bounds = array<i64: 512, 128>}]} {
    %c0_i32 = arith.constant 0 : i32
    %0 = arith.cmpi eq, %arg0, %c0_i32 : i32
    %c0_i32_0 = arith.constant 0 : i32
    %1 = arith.cmpi eq, %arg1, %c0_i32_0 : i32
    %2 = arith.andi %0, %1 : i1
    %3 = arith.extui %2 : i1 to i32
    %c0_i32_1 = arith.constant 0 : i32
    %4 = arith.cmpi ne, %3, %c0_i32_1 : i32
    scf.if %4 {
      tpu.enqueue_dma source(%arg2 : memref<512x512xbf16, #tpu.memory_space<any>>) target(%arg7 : memref<512x512xbf16, #tpu.memory_space<vmem>>) target_semaphore(%arg11 : memref<!tpu.dma_semaphore, #tpu.memory_space<semaphore_mem>>)
      tpu.wait_dma2 semaphore(%arg11 : memref<!tpu.dma_semaphore, #tpu.memory_space<semaphore_mem>>) src(%arg2 : memref<512x512xbf16, #tpu.memory_space<any>>) dst(%arg7 : memref<512x512xbf16, #tpu.memory_space<vmem>>)
    } else {
    }
    %c256_i32 = arith.constant 256 : i32
    %5 = arith.muli %arg1, %c256_i32 : i32
    %6 = tpu.assume_multiple %5, 128 : i32
    %7 = arith.index_cast %6 : i32 to index
    %c0 = arith.constant 0 : index
    %8 = vector.load %arg7[%7, %c0] : memref<512x512xbf16, #tpu.memory_space<vmem>>, vector<256x512xbf16>
    %c0_i32_2 = arith.constant 0 : i32
    %9 = arith.cmpi eq, %arg0, %c0_i32_2 : i32
    %10 = arith.extui %9 : i1 to i32
    %c0_i32_3 = arith.constant 0 : i32
    %11 = arith.cmpi ne, %10, %c0_i32_3 : i32
    scf.if %11 {
      %c0_20 = arith.constant 0 : index
      %c0_21 = arith.constant 0 : index
      %36 = vector.load %arg3[%c0_20, %c0_21] : memref<512x128xbf16, #tpu.memory_space<vmem>>, vector<512x128xbf16>
      %cst_22 = arith.constant dense<0.000000e+00> : vector<256x128xf32>
      %37 = tpu.matmul %8, %36, %cst_22 {dimension_numbers = #tpu.dot_dimension_numbers<[1], [0], [0], [1], [0, 0, 1, 1], [], []>} : vector<256x512xbf16>, vector<512x128xbf16>, vector<256x128xf32> -> vector<256x128xf32>
      %c0_23 = arith.constant 0 : index
      %c0_24 = arith.constant 0 : index
      %38 = vector.load %arg10[%c0_23, %c0_24] : memref<256x128xf32, #tpu.memory_space<vmem>>, vector<256x128xf32>
      tpu.vector_store %arg10[%c0_23, %c0_24], %37 {strides = array<i32>} : memref<256x128xf32, #tpu.memory_space<vmem>>, vector<256x128xf32>,
    } else {
    }
    %c1_i32 = arith.constant 1 : i32
    %12 = arith.cmpi eq, %arg0, %c1_i32 : i32
    %13 = arith.extui %12 : i1 to i32
    %c0_i32_4 = arith.constant 0 : i32
    %14 = arith.cmpi ne, %13, %c0_i32_4 : i32
    scf.if %14 {
      %c0_20 = arith.constant 0 : index
      %c0_21 = arith.constant 0 : index
      %36 = vector.load %arg8[%c0_20, %c0_21] : memref<512x128xbf16, #tpu.memory_space<vmem>>, vector<512x128xbf16>
      %cst_22 = arith.constant dense<0.000000e+00> : vector<256x128xf32>
      %37 = tpu.matmul %8, %36, %cst_22 {dimension_numbers = #tpu.dot_dimension_numbers<[1], [0], [0], [1], [0, 0, 1, 1], [], []>} : vector<256x512xbf16>, vector<512x128xbf16>, vector<256x128xf32> -> vector<256x128xf32>
      %c0_23 = arith.constant 0 : index
      %c0_24 = arith.constant 0 : index
      %38 = vector.load %arg10[%c0_23, %c0_24] : memref<256x128xf32, #tpu.memory_space<vmem>>, vector<256x128xf32>
      tpu.vector_store %arg10[%c0_23, %c0_24], %37 {strides = array<i32>} : memref<256x128xf32, #tpu.memory_space<vmem>>, vector<256x128xf32>,
    } else {
    }
    %c2_i32 = arith.constant 2 : i32
    %15 = arith.cmpi eq, %arg0, %c2_i32 : i32
    %16 = arith.extui %15 : i1 to i32
    %c0_i32_5 = arith.constant 0 : i32
    %17 = arith.cmpi ne, %16, %c0_i32_5 : i32
    scf.if %17 {
      %c0_20 = arith.constant 0 : index
      %c0_21 = arith.constant 0 : index
      %36 = vector.load %arg9[%c0_20, %c0_21] : memref<512x128xbf16, #tpu.memory_space<vmem>>, vector<512x128xbf16>
      %cst_22 = arith.constant dense<0.000000e+00> : vector<256x128xf32>
      %37 = tpu.matmul %8, %36, %cst_22 {dimension_numbers = #tpu.dot_dimension_numbers<[1], [0], [0], [1], [0, 0, 1, 1], [], []>} : vector<256x512xbf16>, vector<512x128xbf16>, vector<256x128xf32> -> vector<256x128xf32>
      %c0_23 = arith.constant 0 : index
      %c0_24 = arith.constant 0 : index
      %38 = vector.load %arg10[%c0_23, %c0_24] : memref<256x128xf32, #tpu.memory_space<vmem>>, vector<256x128xf32>
      tpu.vector_store %arg10[%c0_23, %c0_24], %37 {strides = array<i32>} : memref<256x128xf32, #tpu.memory_space<vmem>>, vector<256x128xf32>,
    } else {
    }
    %c0_6 = arith.constant 0 : index
    %c0_7 = arith.constant 0 : index
    %18 = vector.load %arg10[%c0_6, %c0_7] : memref<256x128xf32, #tpu.memory_space<vmem>>, vector<256x128xf32>
    %19 = arith.truncf %18 : vector<256x128xf32> to vector<256x128xbf16>
    %c0_8 = arith.constant 0 : index
    %c0_9 = arith.constant 0 : index
    %c0_10 = arith.constant 0 : index
    %20 = vector.load %arg4[%c0_8, %c0_9, %c0_10] : memref<1x128x128xbf16, #tpu.memory_space<vmem>>, vector<1x128x128xbf16>
    %21 = vector.shape_cast %20 : vector<1x128x128xbf16> to vector<128x128xbf16>
    %cst = arith.constant dense<0.000000e+00> : vector<256x128xf32>
    %22 = tpu.matmul %19, %21, %cst {dimension_numbers = #tpu.dot_dimension_numbers<[1], [0], [0], [1], [0, 0, 1, 1], [], []>} : vector<256x128xbf16>, vector<128x128xbf16>, vector<256x128xf32> -> vector<256x128xf32>
    %c0_11 = arith.constant 0 : index
    %c0_12 = arith.constant 0 : index
    %c0_13 = arith.constant 0 : index
    %23 = vector.load %arg5[%c0_11, %c0_12, %c0_13] : memref<1x1x128xf32, #tpu.memory_space<vmem>>, vector<1x1x128xf32>
    %24 = vector.shape_cast %23 : vector<1x1x128xf32> to vector<1x128xf32>
    %25 = vector.broadcast %24 : vector<1x128xf32> to vector<256x128xf32>
    %26 = arith.addf %22, %25 : vector<256x128xf32>
    %c0_i32_14 = arith.constant 0 : i32
    %27 = arith.cmpi eq, %arg0, %c0_i32_14 : i32
    %28 = arith.extui %27 : i1 to i32
    %c0_i32_15 = arith.constant 0 : i32
    %29 = arith.cmpi ne, %28, %c0_i32_15 : i32
    scf.if %29 {
      %cst_20 = arith.constant 0.000000e+00 : f32
      %36 = vector.broadcast %cst_20 : f32 to vector<256x128xf32>
      %37 = arith.maximumf %26, %36 : vector<256x128xf32>
      %38 = arith.truncf %37 : vector<256x128xf32> to vector<256x128xbf16>
      %39 = arith.index_cast %6 : i32 to index
      %c0_21 = arith.constant 0 : index
      %40 = vector.load %arg8[%39, %c0_21] : memref<512x128xbf16, #tpu.memory_space<vmem>>, vector<256x128xbf16>
      tpu.vector_store %arg8[%39, %c0_21], %38 {strides = array<i32>} : memref<512x128xbf16, #tpu.memory_space<vmem>>, vector<256x128xbf16>,
    } else {
    }
    %c1_i32_16 = arith.constant 1 : i32
    %30 = arith.cmpi eq, %arg0, %c1_i32_16 : i32
    %31 = arith.extui %30 : i1 to i32
    %c0_i32_17 = arith.constant 0 : i32
    %32 = arith.cmpi ne, %31, %c0_i32_17 : i32
    scf.if %32 {
      %cst_20 = arith.constant 0.000000e+00 : f32
      %36 = vector.broadcast %cst_20 : f32 to vector<256x128xf32>
      %37 = arith.maximumf %26, %36 : vector<256x128xf32>
      %38 = arith.truncf %37 : vector<256x128xf32> to vector<256x128xbf16>
      %39 = arith.index_cast %6 : i32 to index
      %c0_21 = arith.constant 0 : index
      %40 = vector.load %arg9[%39, %c0_21] : memref<512x128xbf16, #tpu.memory_space<vmem>>, vector<256x128xbf16>
      tpu.vector_store %arg9[%39, %c0_21], %38 {strides = array<i32>} : memref<512x128xbf16, #tpu.memory_space<vmem>>, vector<256x128xbf16>,
    } else {
    }
    %c2_i32_18 = arith.constant 2 : i32
    %33 = arith.cmpi eq, %arg0, %c2_i32_18 : i32
    %34 = arith.extui %33 : i1 to i32
    %c0_i32_19 = arith.constant 0 : i32
    %35 = arith.cmpi ne, %34, %c0_i32_19 : i32
    scf.if %35 {
      %36 = arith.index_cast %6 : i32 to index
      %c0_20 = arith.constant 0 : index
      %37 = vector.load %arg6[%36, %c0_20] : memref<512x128xf32, #tpu.memory_space<vmem>>, vector<256x128xf32>
      tpu.vector_store %arg6[%36, %c0_20], %26 {strides = array<i32>} : memref<512x128xf32, #tpu.memory_space<vmem>>, vector<256x128xf32>,
    } else {
    }
    return
  }
  func.func @transform_1(%arg0: i32, %arg1: i32) -> (i32, i32) {
    %c0_i32 = arith.constant 0 : i32
    %c0_i32_0 = arith.constant 0 : i32
    %c0_i32_1 = arith.constant 0 : i32
    return %c0_i32, %c0_i32_0 : i32, i32
  }
  func.func @transform_2(%arg0: i32, %arg1: i32) -> (i32, i32, i32) {
    %c0_i32 = arith.constant 0 : i32
    %c0_i32_0 = arith.constant 0 : i32
    %c0_i32_1 = arith.constant 0 : i32
    return %arg0, %c0_i32, %c0_i32_0 : i32, i32, i32
  }
  func.func @transform_3(%arg0: i32, %arg1: i32) -> (i32, i32, i32) {
    %c0_i32 = arith.constant 0 : i32
    %c0_i32_0 = arith.constant 0 : i32
    %c0_i32_1 = arith.constant 0 : i32
    return %arg0, %c0_i32, %c0_i32_0 : i32, i32, i32
  }
  func.func @transform_4(%arg0: i32, %arg1: i32) -> (i32, i32) {
    %c0_i32 = arith.constant 0 : i32
    %c0_i32_0 = arith.constant 0 : i32
    %c0_i32_1 = arith.constant 0 : i32
    return %c0_i32, %c0_i32_0 : i32, i32
  }
}

</mosaic_0001>

<llo_original>
// kernel: _gcn3_forward_fused.1
$region0: #{_gcn3_forward_fused.1}
  #allocation0 [shape = 'u32[]', space=smem, size = 0x4, offset = 0x4, fixed_abs, tag = 'smem constant byte address 0x4 - core index']
  #allocation1 [shape = 'u32[144,128]{1,0:T(1,128)}', space=vmem, size = 0x12000, scoped, tag = 'internal scratch']
  #allocation2 [shape = 'bf16[512,512]{1,0:T(16,128)(2,1)}', space=vmem, size = 0x80000, scoped, tag = 'scratch operand']
  #allocation3 [shape = 'bf16[512,128]{1,0:T(16,128)(2,1)}', space=vmem, size = 0x20000, scoped, tag = 'scratch operand']
  #allocation4 [shape = 'bf16[512,128]{1,0:T(16,128)(2,1)}', space=vmem, size = 0x20000, scoped, tag = 'scratch operand']
  #allocation5 [shape = 'f32[256,128]{1,0:T(8,128)}', space=vmem, size = 0x20000, scoped, tag = 'scratch operand']
  #allocation6 [shape = 's32[1]{0}', space=sflag, size = 0x4, scoped, tag = 'scratch operand']
  #allocation13 [shape = 's32[]', space=sflag, size = 0x4, offset = 0, fixed_abs, tag = 'sflag constant byte address 0x0 - dummy sync flag']
  %s0 = inlined_call_operand.hbm [shape: bf16[512,512], index: 0, kind: input, shape index: {}]
  %s1 = inlined_call_operand.hbm [shape: bf16[512,128], index: 1, kind: input, shape index: {}]
  %s2 = inlined_call_operand.hbm [shape: bf16[3,128,128], index: 2, kind: input, shape index: {}]
  %s3 = inlined_call_operand.vmem [shape: f32[3,1,128], index: 3, kind: input, shape index: {}]
  %s4 = inlined_call_operand.hbm [shape: f32[512,128], index: 4, kind: output, shape index: {}]
  %s5 = sld [smem:[#allocation0]]
  $region81: #{_gcn3_forward_fused.1} parent=0
    _
  %s7 = ssub.s32 1, %s5
  %s8 = scalar_select 0, %s7, %s5
  $region1: #{_gcn3_forward_fused.1} parent=0
    #allocation7 [shape = 'u8[131072]{0}', space=vmem, size = 0x20000, scoped, tag = 'input window, operand 1, single buffered']
    #allocation8 [shape = 's32[2]{0}', space=sflag, size = 0x8, scoped, tag = 'scoped memory for _gcn3_forward_fused.1']
    #allocation9 [shape = 's32[2]{0}', space=sflag, size = 0x8, scoped, tag = 'scoped memory for _gcn3_forward_fused.1']
    #allocation10 [shape = 'u8[65536]{0}', space=vmem, size = 0x10000, scoped, tag = 'input window, operand 2']
    #allocation11 [shape = 's32[2]{0}', space=sflag, size = 0x8, scoped, tag = 'scoped memory for _gcn3_forward_fused.1']
    #allocation12 [shape = 'u8[262144]{0}', space=vmem, size = 0x40000, scoped, tag = 'output window, operand 0, single buffered']
    %9 = vsyncpa [#allocation8], 0
    %10 = vsyncpa [#allocation11], 0
    %s11 = scalar_lea.sflag [#allocation11], 1
    %12 = vsyncpa %s11, 0
    %13 = vsyncpa [#allocation9], 0
    loop: start=0, step=1, limit=8
    $region2: #{_gcn3_forward_fused.1} parent=1 // loop_pre_header
      _
    $region3: #{_gcn3_forward_fused.1} parent=1 // loop_header
      %s15 = sphi 0, %s19
      %p16 = scmp.ge.s32.totalorder %s15, 8
      %s22 = sphi 0, %s34
      %s23 = sphi 0, %s30
      %s24 = sphi 0, %s22
      %s25 = sphi 0, %s23
      %s26 = sphi 0, %s24
      %s27 = sphi 0, %s25
      %s35 = sphi 0, %s35
      %s37 = sphi 0, %s35
      %s38 = sphi 0, %s37
      %s52 = sphi 0, %s38
      %s58 = sphi 0, %s60
      %s61 = sphi 0, %s58
      %s62 = sphi 0, %s61
      %s78 = sphi 0, %s62
      %s84 = sphi 0, %s86
      %s87 = sphi 0, %s84
      %s88 = sphi 0, %s87
      %s104 = sphi 0, %s88
      %s108 = sphi 0, %s108
      %s110 = sphi 0, %s108
      %s111 = sphi 0, %s110
      %s125 = sphi 0, %s111
    $region4: #{_gcn3_forward_fused.1} parent=1 // loop_header_branch
      %18 = sbr.rel (%p16) target = $region8
    $region5: #{_gcn3_forward_fused.1} parent=1 // loop_body
      %s20 = ssub.s32 %s15, 1
      %s21 = ssub.s32 %s15, 2
      %s28 = sadd.s32 1, %s23
      %p29 = scmp.ge.s32.totalorder %s28, 2
      %s30 = scalar_select %p29, 0, %s28
      %s31 = sadd.s32 1, %s22
      %s32 = scalar_select %p29, %s31, %s22
      %p33 = scmp.ge.s32.totalorder %s32, 3
      %s34 = scalar_select %p33, 0, %s32
      %s36 = sadd.s32 %s35, 1
      %p39 = scmp.eq.s32.totalorder %s15, 5
      %p40 = scmp.ne.s32.totalorder %s35, %s37
      %p41 = scmp.eq.s32.totalorder %s15, 0
      %p42 = por %p40, %p41
      %p43 = scmp.ne.s32.totalorder %s35, %s37
      %p44 = scmp.eq.s32.totalorder %s20, 5
      %p45 = por %p43, %p44
      %p46 = scmp.ne.s32.totalorder %s37, %s38
      %p47 = scmp.eq.s32.totalorder %s20, 0
      %p48 = por %p46, %p47
      %p49 = scmp.ne.s32.totalorder %s37, %s38
      %p50 = scmp.eq.s32.totalorder %s21, 5
      %p51 = por %p49, %p50
      %p53 = scmp.ne.s32.totalorder %s38, %s52
      %p54 = scmp.eq.s32.totalorder %s21, 0
      %p55 = por %p53, %p54
      %s56 = ssub.s32 %s22, %s34
      %p57 = scmp.eq.s32.totalorder %s56, 0
      %s59 = sadd.s32 %s58, 1
      %s60 = scalar_select %p57, %s58, %s59
      %p63 = pneg %p57
      %p64 = scmp.eq.s32.totalorder %s15, 5
      %p65 = por %p63, %p64
      %p66 = scmp.ne.s32.totalorder %s58, %s61
      %p67 = scmp.eq.s32.totalorder %s15, 0
      %p68 = por %p66, %p67
      %p69 = scmp.ne.s32.totalorder %s58, %s61
      %p70 = scmp.eq.s32.totalorder %s20, 5
      %p71 = por %p69, %p70
      %p72 = scmp.ne.s32.totalorder %s61, %s62
      %p73 = scmp.eq.s32.totalorder %s20, 0
      %p74 = por %p72, %p73
      %p75 = scmp.ne.s32.totalorder %s61, %s62
      %p76 = scmp.eq.s32.totalorder %s21, 5
      %p77 = por %p75, %p76
      %p79 = scmp.ne.s32.totalorder %s62, %s78
      %p80 = scmp.eq.s32.totalorder %s21, 0
      %p81 = por %p79, %p80
      %s82 = ssub.s32 %s22, %s34
      %p83 = scmp.eq.s32.totalorder %s82, 0
      %s85 = sadd.s32 %s84, 1
      %s86 = scalar_select %p83, %s84, %s85
      %p89 = pneg %p83
      %p90 = scmp.eq.s32.totalorder %s15, 5
      %p91 = por %p89, %p90
      %p92 = scmp.ne.s32.totalorder %s84, %s87
      %p93 = scmp.eq.s32.totalorder %s15, 0
      %p94 = por %p92, %p93
      %p95 = scmp.ne.s32.totalorder %s84, %s87
      %p96 = scmp.eq.s32.totalorder %s20, 5
      %p97 = por %p95, %p96
      %p98 = scmp.ne.s32.totalorder %s87, %s88
      %p99 = scmp.eq.s32.totalorder %s20, 0
      %p100 = por %p98, %p99
      %p101 = scmp.ne.s32.totalorder %s87, %s88
      %p102 = scmp.eq.s32.totalorder %s21, 5
      %p103 = por %p101, %p102
      %p105 = scmp.ne.s32.totalorder %s88, %s104
      %p106 = scmp.eq.s32.totalorder %s21, 0
      %p107 = por %p105, %p106
      %s109 = sadd.s32 %s108, 1
      %p112 = scmp.eq.s32.totalorder %s15, 5
      %p113 = scmp.ne.s32.totalorder %s108, %s110
      %p114 = scmp.eq.s32.totalorder %s15, 0
      %p115 = por %p113, %p114
      %p116 = scmp.ne.s32.totalorder %s108, %s110
      %p117 = scmp.eq.s32.totalorder %s20, 5
      %p118 = por %p116, %p117
      %p119 = scmp.ne.s32.totalorder %s110, %s111
      %p120 = scmp.eq.s32.totalorder %s20, 0
      %p121 = por %p119, %p120
      %p122 = scmp.ne.s32.totalorder %s110, %s111
      %p123 = scmp.eq.s32.totalorder %s21, 5
      %p124 = por %p122, %p123
      %p126 = scmp.ne.s32.totalorder %s111, %s125
      %p127 = scmp.eq.s32.totalorder %s21, 0
      %p128 = por %p126, %p127
      %p129 = scmp.le.s32.totalorder 1, %s15
      %p130 = scmp.lt.s32.totalorder %s15, 7
      %p131 = pnand %p129, %p130
      %p132 = pneg %p131
      // Predicated region
      $region9: #{_gcn3_forward_fused.1} parent=5 // pred_check
        _
      $region10: #{_gcn3_forward_fused.1} parent=5 // pred_check_branch
        %134 = sbr.rel (%p131) target = $region12
      $region11: #{_gcn3_forward_fused.1} parent=5 // pred_region
        %s135 = ssub.s32 %s15, 1
        // Predicated region
        $region13: #{_gcn3_forward_fused.1} parent=11 // pred_check
          %p136 = pneg %p48
        $region14: #{_gcn3_forward_fused.1} parent=11 // pred_check_branch
          %138 = sbr.rel (%p136) target = $region16
        $region15: #{_gcn3_forward_fused.1} parent=11 // pred_region
          %s140 = ssub.s32 4096, 4096
          %141 = vsyncadd [#allocation8], %s140
          %s142 = sshll.u32 [#allocation7], 4
          %s143 = int_to_ptr.vmem [resolvable:$true] %s142
          %148 = dma.hbm_to_vmem [thread:$0]  %s1, 4096, %s143, [#allocation8], 64, 64, 4
        $region16: #{_gcn3_forward_fused.1} parent=11 // pred_fallthru
          _
      $region12: #{_gcn3_forward_fused.1} parent=5 // pred_fallthru
        _
      %p149 = scmp.lt.s32.totalorder %s15, 6
      // Predicated region
      $region17: #{_gcn3_forward_fused.1} parent=5 // pred_check
        %p150 = pneg %p149
      $region18: #{_gcn3_forward_fused.1} parent=5 // pred_check_branch
        %152 = sbr.rel (%p150) target = $region20
      $region19: #{_gcn3_forward_fused.1} parent=5 // pred_region
        // Predicated region
        $region21: #{_gcn3_forward_fused.1} parent=19 // pred_check
          %p153 = pneg %p68
        $region22: #{_gcn3_forward_fused.1} parent=19 // pred_check_branch
          %155 = sbr.rel (%p153) target = $region24
        $region23: #{_gcn3_forward_fused.1} parent=19 // pred_region
          %s156 = sand.u32 %s58, 1
          %s157 = scalar_lea.sflag [#allocation11], %s156
          %s158 = sand.u32 %s58, 1
          %s159 = smul.addr %s158, 64
          %s160 = scalar_lea.vmem [#allocation10], %s159
          %s162 = ssub.s32 1024, 1024
          %163 = vsyncadd %s157, %s162
          %s164 = smul.addr %s22, 16
          %s165 = smul.addr %s164, 64
          %s166 = scalar_lea.hbm %s2, %s165
          %s167 = sshll.u32 %s160, 4
          %s168 = int_to_ptr.vmem [resolvable:$true] %s167
          %173 = dma.hbm_to_vmem [thread:$0]  %s166, 1024, %s168, %s157, 64, 64, 4
        $region24: #{_gcn3_forward_fused.1} parent=19 // pred_fallthru
          _
        // Predicated region
        $region25: #{_gcn3_forward_fused.1} parent=19 // pred_check
          %p174 = pneg %p94
        $region26: #{_gcn3_forward_fused.1} parent=19 // pred_check_branch
          %176 = sbr.rel (%p174) target = $region28
        $region27: #{_gcn3_forward_fused.1} parent=19 // pred_region
          %p177 = scmp.lt.s32.totalorder %s22, 2
          %s178 = scalar_select %p177, %s22, 2
          %s179 = scalar_lea.vmem %s3, %s178
        $region28: #{_gcn3_forward_fused.1} parent=19 // pred_fallthru
          _
      $region20: #{_gcn3_forward_fused.1} parent=5 // pred_fallthru
        _
      %p180 = scmp.le.s32.totalorder 1, %s15
      %p181 = scmp.lt.s32.totalorder %s15, 7
      %p182 = pnand %p180, %p181
      %p183 = pneg %p182
      // Predicated region
      $region29: #{_gcn3_forward_fused.1} parent=5 // pred_check
        _
      $region30: #{_gcn3_forward_fused.1} parent=5 // pred_check_branch
        %185 = sbr.rel (%p182) target = $region32
      $region31: #{_gcn3_forward_fused.1} parent=5 // pred_region
        %s186 = ssub.s32 %s15, 1
        // Predicated region
        $region33: #{_gcn3_forward_fused.1} parent=31 // pred_check
          %p187 = pneg %p48
        $region34: #{_gcn3_forward_fused.1} parent=31 // pred_check_branch
          %189 = sbr.rel (%p187) target = $region36
        $region35: #{_gcn3_forward_fused.1} parent=31 // pred_region
          %190 = dma.done [#allocation8], 4096
        $region36: #{_gcn3_forward_fused.1} parent=31 // pred_fallthru
          _
        %s191 = sand.u32 %s61, 1
        %s192 = scalar_lea.sflag [#allocation11], %s191
        %s193 = sand.u32 %s61, 1
        %s194 = smul.addr %s193, 64
        %s195 = scalar_lea.vmem [#allocation10], %s194
        // Predicated region
        $region37: #{_gcn3_forward_fused.1} parent=31 // pred_check
          %p196 = pneg %p74
        $region38: #{_gcn3_forward_fused.1} parent=31 // pred_check_branch
          %198 = sbr.rel (%p196) target = $region40
        $region39: #{_gcn3_forward_fused.1} parent=31 // pred_region
          %199 = dma.done %s192, 1024
        $region40: #{_gcn3_forward_fused.1} parent=31 // pred_fallthru
          _
        %p200 = pneg %p48
        %p201 = pneg %p45
        %s202 = sand.u32 %s61, 1
        %s203 = scalar_lea.sflag [#allocation11], %s202
        %s204 = sand.u32 %s61, 1
        %s205 = smul.addr %s204, 64
        %s206 = scalar_lea.vmem [#allocation10], %s205
        %p207 = pneg %p74
        %p208 = pneg %p71
        %p209 = scmp.lt.s32.totalorder %s24, 2
        %s210 = scalar_select %p209, %s24, 2
        %s211 = scalar_lea.vmem %s3, %s210
        %p212 = pneg %p100
        %p213 = pneg %p97
        %p214 = pneg %p121
        %p215 = pneg %p118
        %p216 = scmp.lt.s32.totalorder %s24, 2
        %s217 = scalar_select %p216, %s24, 2
        %s218 = scalar_lea.vmem %s3, %s217
        %p220 = scmp.eq.s32.totalorder %s24, 0
        %p221 = scmp.eq.s32.totalorder %s25, 0
        %p222 = pnand %p220, %p221
        %p223 = pneg %p222
        // Predicated region
        $region41: #{_gcn3_forward_fused.1} parent=31 // pred_check
          _
        $region42: #{_gcn3_forward_fused.1} parent=31 // pred_check_branch
          %225 = sbr.rel (%p222) target = $region44
        $region43: #{_gcn3_forward_fused.1} parent=31 // pred_region
          #allocation14 [shape = 'u32[9]{0}', space=smem, size = 0x24, scoped, tag = 'DMA stride descriptor']
          %s227 = sshll.u32 1, 14
          %s228 = sxor.u32 4294967295, %s227
          %s230 = sld [smem:[#allocation0]]
          %s231 = sadd.s32 2, %s230
          %s233 = sshll.u32 7, 26
          %s234 = sxor.u32 4294967295, %s233
          %s235 = sand.u32 0, %s234
          %s236 = sshll.u32 %s231, 26
          %s237 = sor.u32 %s235, %s236
          %s238 = sshll.u32 [#allocation2], 4
          %s239 = int_to_ptr.vmem [resolvable:$true] %s238
          %242 = sst [smem:[#allocation14]] 512
          %s243 = scalar_lea.smem [#allocation14], 1
          %244 = sst [smem:[%s243]] 512
          %s245 = scalar_lea.smem [#allocation14], 2
          %246 = sst [smem:[%s245]] 4
          %s247 = scalar_lea.smem [#allocation14], 3
          %248 = sst [smem:[%s247]] 64
          %s249 = scalar_lea.smem [#allocation14], 4
          %250 = sst [smem:[%s249]] 128
          %s251 = scalar_lea.smem [#allocation14], 5
          %252 = sst [smem:[%s251]] 2
          %s253 = scalar_lea.smem [#allocation14], 6
          %254 = sst [smem:[%s253]] 256
          %s255 = scalar_lea.smem [#allocation14], 7
          %256 = sst [smem:[%s255]] 64
          %s257 = scalar_lea.smem [#allocation14], 8
          %258 = sst [smem:[%s257]] 4
          %260 = dma.general %s0, 16384, %s239, [#allocation6], [#allocation13], [#allocation14], %s237, 0
          %s261 = smul.u32 4, 64
          %s262 = smul.u32 %s261, 4
          %s263 = sshll.u32 %s262, 4
          %264 = dma.done [#allocation6], %s263
        $region44: #{_gcn3_forward_fused.1} parent=31 // pred_fallthru
          _
        %s265 = smul.u32 %s25, 256
        %s266 = sshra.s32 %s265, 4
        %s267 = sand.u32 %s265, 15
        %s268 = smul.u32 %s266, 4
        %s269 = smul.addr %s268, 8
        %s270 = scalar_lea.vmem [#allocation2], %s269
        %v271 = vld [vmem:[%s270] sm:$0xff]
        %v272 = vld [vmem:[%s270 + $0x8] sm:$0xff]
        %v273 = vld [vmem:[%s270 + $0x10] sm:$0xff]
        %v274 = vld [vmem:[%s270 + $0x18] sm:$0xff]
        %v275 = vld [vmem:[%s270 + $0x20] sm:$0xff]
        %v276 = vld [vmem:[%s270 + $0x28] sm:$0xff]
        %v277 = vld [vmem:[%s270 + $0x30] sm:$0xff]
        %v278 = vld [vmem:[%s270 + $0x38] sm:$0xff]
        %v279 = vld [vmem:[%s270 + $0x40] sm:$0xff]
        %v280 = vld [vmem:[%s270 + $0x48] sm:$0xff]
        %v281 = vld [vmem:[%s270 + $0x50] sm:$0xff]
        %v282 = vld [vmem:[%s270 + $0x58] sm:$0xff]
        %v283 = vld [vmem:[%s270 + $0x60] sm:$0xff]
        %v284 = vld [vmem:[%s270 + $0x68] sm:$0xff]
        %v285 = vld [vmem:[%s270 + $0x70] sm:$0xff]
        %v286 = vld [vmem:[%s270 + $0x78] sm:$0xff]
        %v287 = vld [vmem:[%s270 + $0x80] sm:$0xff]
        %v288 = vld [vmem:[%s270 + $0x88] sm:$0xff]
        %v289 = vld [vmem:[%s270 + $0x90] sm:$0xff]
        %v290 = vld [vmem:[%s270 + $0x98] sm:$0xff]
        %v291 = vld [vmem:[%s270 + $0xa0] sm:$0xff]
        %v292 = vld [vmem:[%s270 + $0xa8] sm:$0xff]
        %v293 = vld [vmem:[%s270 + $0xb0] sm:$0xff]
        %v294 = vld [vmem:[%s270 + $0xb8] sm:$0xff]
        %v295 = vld [vmem:[%s270 + $0xc0] sm:$0xff]
        %v296 = vld [vmem:[%s270 + $0xc8] sm:$0xff]
        %v297 = vld [vmem:[%s270 + $0xd0] sm:$0xff]
        %v298 = vld [vmem:[%s270 + $0xd8] sm:$0xff]
        %v299 = vld [vmem:[%s270 + $0xe0] sm:$0xff]
        %v300 = vld [vmem:[%s270 + $0xe8] sm:$0xff]
        %v301 = vld [vmem:[%s270 + $0xf0] sm:$0xff]
        %v302 = vld [vmem:[%s270 + $0xf8] sm:$0xff]
        %v303 = vld [vmem:[%s270 + $0x100] sm:$0xff]
        %v304 = vld [vmem:[%s270 + $0x108] sm:$0xff]
        %v305 = vld [vmem:[%s270 + $0x110] sm:$0xff]
        %v306 = vld [vmem:[%s270 + $0x118] sm:$0xff]
        %v307 = vld [vmem:[%s270 + $0x120] sm:$0xff]
        %v308 = vld [vmem:[%s270 + $0x128] sm:$0xff]
        %v309 = vld [vmem:[%s270 + $0x130] sm:$0xff]
        %v310 = vld [vmem:[%s270 + $0x138] sm:$0xff]
        %v311 = vld [vmem:[%s270 + $0x140] sm:$0xff]
        %v312 = vld [vmem:[%s270 + $0x148] sm:$0xff]
        %v313 = vld [vmem:[%s270 + $0x150] sm:$0xff]
        %v314 = vld [vmem:[%s270 + $0x158] sm:$0xff]
        %v315 = vld [vmem:[%s270 + $0x160] sm:$0xff]
        %v316 = vld [vmem:[%s270 + $0x168] sm:$0xff]
        %v317 = vld [vmem:[%s270 + $0x170] sm:$0xff]
        %v318 = vld [vmem:[%s270 + $0x178] sm:$0xff]
        %v319 = vld [vmem:[%s270 + $0x180] sm:$0xff]
        %v320 = vld [vmem:[%s270 + $0x188] sm:$0xff]
        %v321 = vld [vmem:[%s270 + $0x190] sm:$0xff]
        %v322 = vld [vmem:[%s270 + $0x198] sm:$0xff]
        %v323 = vld [vmem:[%s270 + $0x1a0] sm:$0xff]
        %v324 = vld [vmem:[%s270 + $0x1a8] sm:$0xff]
        %v325 = vld [vmem:[%s270 + $0x1b0] sm:$0xff]
        %v326 = vld [vmem:[%s270 + $0x1b8] sm:$0xff]
        %v327 = vld [vmem:[%s270 + $0x1c0] sm:$0xff]
        %v328 = vld [vmem:[%s270 + $0x1c8] sm:$0xff]
        %v329 = vld [vmem:[%s270 + $0x1d0] sm:$0xff]
        %v330 = vld [vmem:[%s270 + $0x1d8] sm:$0xff]
        %v331 = vld [vmem:[%s270 + $0x1e0] sm:$0xff]
        %v332 = vld [vmem:[%s270 + $0x1e8] sm:$0xff]
        %v333 = vld [vmem:[%s270 + $0x1f0] sm:$0xff]
        %v334 = vld [vmem:[%s270 + $0x1f8] sm:$0xff]
        // Predicated region
        $region45: #{_gcn3_forward_fused.1} parent=31 // pred_check
          %p335 = pneg %p220
        $region46: #{_gcn3_forward_fused.1} parent=31 // pred_check_branch
          %337 = sbr.rel (%p335) target = $region48
        $region47: #{_gcn3_forward_fused.1} parent=31 // pred_region
          %v338 = vld [vmem:[#allocation7] sm:$0xf]
          %v339 = vld [vmem:[#allocation7 + $0x4] sm:$0xf]
          %v340 = vld [vmem:[#allocation7 + $0x8] sm:$0xf]
          %v341 = vld [vmem:[#allocation7 + $0xc] sm:$0xf]
          %v342 = vld [vmem:[#allocation7 + $0x10] sm:$0xf]
          %v343 = vld [vmem:[#allocation7 + $0x14] sm:$0xf]
          %v344 = vld [vmem:[#allocation7 + $0x18] sm:$0xf]
          %v345 = vld [vmem:[#allocation7 + $0x1c] sm:$0xf]
          %v346 = vld [vmem:[#allocation7 + $0x20] sm:$0xf]
          %v347 = vld [vmem:[#allocation7 + $0x24] sm:$0xf]
          %v348 = vld [vmem:[#allocation7 + $0x28] sm:$0xf]
          %v349 = vld [vmem:[#allocation7 + $0x2c] sm:$0xf]
          %v350 = vld [vmem:[#allocation7 + $0x30] sm:$0xf]
          %v351 = vld [vmem:[#allocation7 + $0x34] sm:$0xf]
          %v352 = vld [vmem:[#allocation7 + $0x38] sm:$0xf]
          %v353 = vld [vmem:[#allocation7 + $0x3c] sm:$0xf]
          %v354 = vld [vmem:[#allocation7 + $0x40] sm:$0xf]
          %v355 = vld [vmem:[#allocation7 + $0x44] sm:$0xf]
          %v356 = vld [vmem:[#allocation7 + $0x48] sm:$0xf]
          %v357 = vld [vmem:[#allocation7 + $0x4c] sm:$0xf]
          %v358 = vld [vmem:[#allocation7 + $0x50] sm:$0xf]
          %v359 = vld [vmem:[#allocation7 + $0x54] sm:$0xf]
          %v360 = vld [vmem:[#allocation7 + $0x58] sm:$0xf]
          %v361 = vld [vmem:[#allocation7 + $0x5c] sm:$0xf]
          %v362 = vld [vmem:[#allocation7 + $0x60] sm:$0xf]
          %v363 = vld [vmem:[#allocation7 + $0x64] sm:$0xf]
          %v364 = vld [vmem:[#allocation7 + $0x68] sm:$0xf]
          %v365 = vld [vmem:[#allocation7 + $0x6c] sm:$0xf]
          %v366 = vld [vmem:[#allocation7 + $0x70] sm:$0xf]
          %v367 = vld [vmem:[#allocation7 + $0x74] sm:$0xf]
          %v368 = vld [vmem:[#allocation7 + $0x78] sm:$0xf]
          %v369 = vld [vmem:[#allocation7 + $0x7c] sm:$0xf]
          %v370 = vld [vmem:[#allocation7 + $0x80] sm:$0xf]
          %v371 = vld [vmem:[#allocation7 + $0x84] sm:$0xf]
          %v372 = vld [vmem:[#allocation7 + $0x88] sm:$0xf]
          %v373 = vld [vmem:[#allocation7 + $0x8c] sm:$0xf]
          %v374 = vld [vmem:[#allocation7 + $0x90] sm:$0xf]
          %v375 = vld [vmem:[#allocation7 + $0x94] sm:$0xf]
          %v376 = vld [vmem:[#allocation7 + $0x98] sm:$0xf]
          %v377 = vld [vmem:[#allocation7 + $0x9c] sm:$0xf]
          %v378 = vld [vmem:[#allocation7 + $0xa0] sm:$0xf]
          %v379 = vld [vmem:[#allocation7 + $0xa4] sm:$0xf]
          %v380 = vld [vmem:[#allocation7 + $0xa8] sm:$0xf]
          %v381 = vld [vmem:[#allocation7 + $0xac] sm:$0xf]
          %v382 = vld [vmem:[#allocation7 + $0xb0] sm:$0xf]
          %v383 = vld [vmem:[#allocation7 + $0xb4] sm:$0xf]
          %v384 = vld [vmem:[#allocation7 + $0xb8] sm:$0xf]
          %v385 = vld [vmem:[#allocation7 + $0xbc] sm:$0xf]
          %v386 = vld [vmem:[#allocation7 + $0xc0] sm:$0xf]
          %v387 = vld [vmem:[#allocation7 + $0xc4] sm:$0xf]
          %v388 = vld [vmem:[#allocation7 + $0xc8] sm:$0xf]
          %v389 = vld [vmem:[#allocation7 + $0xcc] sm:$0xf]
          %v390 = vld [vmem:[#allocation7 + $0xd0] sm:$0xf]
          %v391 = vld [vmem:[#allocation7 + $0xd4] sm:$0xf]
          %v392 = vld [vmem:[#allocation7 + $0xd8] sm:$0xf]
          %v393 = vld [vmem:[#allocation7 + $0xdc] sm:$0xf]
          %v394 = vld [vmem:[#allocation7 + $0xe0] sm:$0xf]
          %v395 = vld [vmem:[#allocation7 + $0xe4] sm:$0xf]
          %v396 = vld [vmem:[#allocation7 + $0xe8] sm:$0xf]
          %v397 = vld [vmem:[#allocation7 + $0xec] sm:$0xf]
          %v398 = vld [vmem:[#allocation7 + $0xf0] sm:$0xf]
          %v399 = vld [vmem:[#allocation7 + $0xf4] sm:$0xf]
          %v400 = vld [vmem:[#allocation7 + $0xf8] sm:$0xf]
          %v401 = vld [vmem:[#allocation7 + $0xfc] sm:$0xf]
          %v466 = vunpack.c.l.b16 %v338
          %v467 = vunpack.c.l.b16 %v339
          %v468 = vunpack.c.l.b16 %v340
          %v469 = vunpack.c.l.b16 %v341
          %v470 = vunpack.c.l.b16 %v342
          %v471 = vunpack.c.l.b16 %v343
          %v472 = vunpack.c.l.b16 %v344
          %v473 = vunpack.c.l.b16 %v345
          %v474 = vunpack.c.l.b16 %v346
          %v475 = vunpack.c.l.b16 %v347
          %v476 = vunpack.c.l.b16 %v348
          %v477 = vunpack.c.l.b16 %v349
          %v478 = vunpack.c.l.b16 %v350
          %v479 = vunpack.c.l.b16 %v351
          %v480 = vunpack.c.l.b16 %v352
          %v481 = vunpack.c.l.b16 %v353
          %v482 = vunpack.c.l.b16 %v354
          %v483 = vunpack.c.l.b16 %v355
          %v484 = vunpack.c.l.b16 %v356
          %v485 = vunpack.c.l.b16 %v357
          %v486 = vunpack.c.l.b16 %v358
          %v487 = vunpack.c.l.b16 %v359
          %v488 = vunpack.c.l.b16 %v360
          %v489 = vunpack.c.l.b16 %v361
          %v490 = vunpack.c.l.b16 %v362
          %v491 = vunpack.c.l.b16 %v363
          %v492 = vunpack.c.l.b16 %v364
          %v493 = vunpack.c.l.b16 %v365
          %v494 = vunpack.c.l.b16 %v366
          %v495 = vunpack.c.l.b16 %v367
          %v496 = vunpack.c.l.b16 %v368
          %v497 = vunpack.c.l.b16 %v369
          %v498 = vunpack.c.l.b16 %v370
          %v499 = vunpack.c.l.b16 %v371
          %v500 = vunpack.c.l.b16 %v372
          %v501 = vunpack.c.l.b16 %v373
          %v502 = vunpack.c.l.b16 %v374
          %v503 = vunpack.c.l.b16 %v375
          %v504 = vunpack.c.l.b16 %v376
          %v505 = vunpack.c.l.b16 %v377
          %v506 = vunpack.c.l.b16 %v378
          %v507 = vunpack.c.l.b16 %v379
          %v508 = vunpack.c.l.b16 %v380
          %v509 = vunpack.c.l.b16 %v381
          %v510 = vunpack.c.l.b16 %v382
          %v511 = vunpack.c.l.b16 %v383
          %v512 = vunpack.c.l.b16 %v384
          %v513 = vunpack.c.l.b16 %v385
          %v514 = vunpack.c.l.b16 %v386
          %v515 = vunpack.c.l.b16 %v387
          %v516 = vunpack.c.l.b16 %v388
          %v517 = vunpack.c.l.b16 %v389
          %v518 = vunpack.c.l.b16 %v390
          %v519 = vunpack.c.l.b16 %v391
          %v520 = vunpack.c.l.b16 %v392
          %v521 = vunpack.c.l.b16 %v393
          %v522 = vunpack.c.l.b16 %v394
          %v523 = vunpack.c.l.b16 %v395
          %v524 = vunpack.c.l.b16 %v396
          %v525 = vunpack.c.l.b16 %v397
          %v526 = vunpack.c.l.b16 %v398
          %v527 = vunpack.c.l.b16 %v399
          %v528 = vunpack.c.l.b16 %v400
          %v529 = vunpack.c.l.b16 %v401
          %v530 = vpack.c.b16 %v467, %v466
          %v531 = vpack.c.b16 %v469, %v468
          %v532 = vpack.c.b16 %v471, %v470
          %v533 = vpack.c.b16 %v473, %v472
          %v534 = vpack.c.b16 %v475, %v474
          %v535 = vpack.c.b16 %v477, %v476
          %v536 = vpack.c.b16 %v479, %v478
          %v537 = vpack.c.b16 %v481, %v480
          %v538 = vpack.c.b16 %v483, %v482
          %v539 = vpack.c.b16 %v485, %v484
          %v540 = vpack.c.b16 %v487, %v486
          %v541 = vpack.c.b16 %v489, %v488
          %v542 = vpack.c.b16 %v491, %v490
          %v543 = vpack.c.b16 %v493, %v492
          %v544 = vpack.c.b16 %v495, %v494
          %v545 = vpack.c.b16 %v497, %v496
          %v546 = vpack.c.b16 %v499, %v498
          %v547 = vpack.c.b16 %v501, %v500
          %v548 = vpack.c.b16 %v503, %v502
          %v549 = vpack.c.b16 %v505, %v504
          %v550 = vpack.c.b16 %v507, %v506
          %v551 = vpack.c.b16 %v509, %v508
          %v552 = vpack.c.b16 %v511, %v510
          %v553 = vpack.c.b16 %v513, %v512
          %v554 = vpack.c.b16 %v515, %v514
          %v555 = vpack.c.b16 %v517, %v516
          %v556 = vpack.c.b16 %v519, %v518
          %v557 = vpack.c.b16 %v521, %v520
          %v558 = vpack.c.b16 %v523, %v522
          %v559 = vpack.c.b16 %v525, %v524
          %v560 = vpack.c.b16 %v527, %v526
          %v561 = vpack.c.b16 %v529, %v528
          %594 = vmatprep.subr.bf16.mxu0 0
          %595 = vmatpush1.bf16.msra.mxu0 %v530
          %596 = vmatprep.subr.bf16.mxu0 0
          %597 = vmatpush1.bf16.msra.mxu0 %v531
          %598 = vmatprep.subr.bf16.mxu0 0
          %599 = vmatpush1.bf16.msra.mxu0 %v532
          %600 = vmatprep.subr.bf16.mxu0 0
          %601 = vmatpush1.bf16.msra.mxu0 %v533
          %602 = vmatprep.subr.bf16.mxu0 0
          %603 = vmatpush1.bf16.msra.mxu0 %v534
          %604 = vmatprep.subr.bf16.mxu0 0
          %605 = vmatpush1.bf16.msra.mxu0 %v535
          %606 = vmatprep.subr.bf16.mxu0 0
          %607 = vmatpush1.bf16.msra.mxu0 %v536
          %608 = vmatprep.subr.bf16.mxu0 0
          %609 = vmatpush1.bf16.msra.mxu0 %v537
          %610 = vmatprep.subr.bf16.mxu0 0
          %611 = vmatpush1.bf16.msra.mxu0 %v538
          %612 = vmatprep.subr.bf16.mxu0 0
          %613 = vmatpush1.bf16.msra.mxu0 %v539
          %614 = vmatprep.subr.bf16.mxu0 0
          %615 = vmatpush1.bf16.msra.mxu0 %v540
          %616 = vmatprep.subr.bf16.mxu0 0
          %617 = vmatpush1.bf16.msra.mxu0 %v541
          %618 = vmatprep.subr.bf16.mxu0 0
          %619 = vmatpush1.bf16.msra.mxu0 %v542
          %620 = vmatprep.subr.bf16.mxu0 0
          %621 = vmatpush1.bf16.msra.mxu0 %v543
          %622 = vmatprep.subr.bf16.mxu0 0
          %623 = vmatpush1.bf16.msra.mxu0 %v544
          %624 = vmatprep.subr.bf16.mxu0 0
          %625 = vmatpush1.bf16.msra.mxu0 %v545
          %626 = vmatprep.mubr.bf16.mxu0 %v272
          %627 = vmatmul.mubr.bf16.gmra.mrb[0].mxu0 %v271
          %v628 = vpop.f32.mrb[0].mxu0
          %v629 = vadd.f32 0.0, %v628
          %v630 = vpop.f32.mrb[0].mxu0
          %v631 = vpop.f32.mrb[0].mxu0
          %v632 = vadd.f32 0.0, %v631
          %v633 = vpop.f32.mrb[0].mxu0
          %634 = vmatprep.mubr.bf16.mxu0 %v276
          %635 = vmatmul.mubr.bf16.gmra.mrb[0].mxu0 %v275
          %v636 = vpop.f32.mrb[0].mxu0
          %v637 = vadd.f32 0.0, %v636
          %v638 = vpop.f32.mrb[0].mxu0
          %v639 = vpop.f32.mrb[0].mxu0
          %v640 = vadd.f32 0.0, %v639
          %v641 = vpop.f32.mrb[0].mxu0
          %642 = vmatprep.mubr.bf16.mxu0 %v280
          %643 = vmatmul.mubr.bf16.gmra.mrb[0].mxu0 %v279
          %v644 = vpop.f32.mrb[0].mxu0
          %v645 = vadd.f32 0.0, %v644
          %v646 = vpop.f32.mrb[0].mxu0
          %v647 = vpop.f32.mrb[0].mxu0
          %v648 = vadd.f32 0.0, %v647
          %v649 = vpop.f32.mrb[0].mxu0
          %650 = vmatprep.mubr.bf16.mxu0 %v284
          %651 = vmatmul.mubr.bf16.gmra.mrb[0].mxu0 %v283
          %v652 = vpop.f32.mrb[0].mxu0
          %v653 = vadd.f32 0.0, %v652
          %v654 = vpop.f32.mrb[0].mxu0
          %v655 = vpop.f32.mrb[0].mxu0
          %v656 = vadd.f32 0.0, %v655
          %v657 = vpop.f32.mrb[0].mxu0
          %658 = vmatprep.mubr.bf16.mxu0 %v288
          %659 = vmatmul.mubr.bf16.gmra.mrb[0].mxu0 %v287
          %v660 = vpop.f32.mrb[0].mxu0
          %v661 = vadd.f32 0.0, %v660
          %v662 = vpop.f32.mrb[0].mxu0
          %v663 = vpop.f32.mrb[0].mxu0
          %v664 = vadd.f32 0.0, %v663
          %v665 = vpop.f32.mrb[0].mxu0
          %666 = vmatprep.mubr.bf16.mxu0 %v292
          %667 = vmatmul.mubr.bf16.gmra.mrb[0].mxu0 %v291
          %v668 = vpop.f32.mrb[0].mxu0
          %v669 = vadd.f32 0.0, %v668
          %v670 = vpop.f32.mrb[0].mxu0
          %v671 = vpop.f32.mrb[0].mxu0
          %v672 = vadd.f32 0.0, %v671
          %v673 = vpop.f32.mrb[0].mxu0
          %674 = vmatprep.mubr.bf16.mxu0 %v296
          %675 = vmatmul.mubr.bf16.gmra.mrb[0].mxu0 %v295
          %v676 = vpop.f32.mrb[0].mxu0
          %v677 = vadd.f32 0.0, %v676
          %v678 = vpop.f32.mrb[0].mxu0
          %v679 = vpop.f32.mrb[0].mxu0
          %v680 = vadd.f32 0.0, %v679
          %v681 = vpop.f32.mrb[0].mxu0
          %682 = vmatprep.mubr.bf16.mxu0 %v300
          %683 = vmatmul.mubr.bf16.gmra.mrb[0].mxu0 %v299
          %v684 = vpop.f32.mrb[0].mxu0
          %v685 = vadd.f32 0.0, %v684
          %v686 = vpop.f32.mrb[0].mxu0
          %v687 = vpop.f32.mrb[0].mxu0
          %v688 = vadd.f32 0.0, %v687
          %v689 = vpop.f32.mrb[0].mxu0
          %690 = vmatprep.mubr.bf16.mxu0 %v304
          %691 = vmatmul.mubr.bf16.gmra.mrb[0].mxu0 %v303
          %v692 = vpop.f32.mrb[0].mxu0
          %v693 = vadd.f32 0.0, %v692
          %v694 = vpop.f32.mrb[0].mxu0
          %v695 = vpop.f32.mrb[0].mxu0
          %v696 = vadd.f32 0.0, %v695
          %v697 = vpop.f32.mrb[0].mxu0
          %698 = vmatprep.mubr.bf16.mxu0 %v308
          %699 = vmatmul.mubr.bf16.gmra.mrb[0].mxu0 %v307
          %v700 = vpop.f32.mrb[0].mxu0
          %v701 = vadd.f32 0.0, %v700
          %v702 = vpop.f32.mrb[0].mxu0
          %v703 = vpop.f32.mrb[0].mxu0
          %v704 = vadd.f32 0.0, %v703
          %v705 = vpop.f32.mrb[0].mxu0
          %706 = vmatprep.mubr.bf16.mxu0 %v312
          %707 = vmatmul.mubr.bf16.gmra.mrb[0].mxu0 %v311
          %v708 = vpop.f32.mrb[0].mxu0
          %v709 = vadd.f32 0.0, %v708
          %v710 = vpop.f32.mrb[0].mxu0
          %v711 = vpop.f32.mrb[0].mxu0
          %v712 = vadd.f32 0.0, %v711
          %v713 = vpop.f32.mrb[0].mxu0
          %714 = vmatprep.mubr.bf16.mxu0 %v316
          %715 = vmatmul.mubr.bf16.gmra.mrb[0].mxu0 %v315
          %v716 = vpop.f32.mrb[0].mxu0
          %v717 = vadd.f32 0.0, %v716
          %v718 = vpop.f32.mrb[0].mxu0
          %v719 = vpop.f32.mrb[0].mxu0
          %v720 = vadd.f32 0.0, %v719
          %v721 = vpop.f32.mrb[0].mxu0
          %722 = vmatprep.mubr.bf16.mxu0 %v320
          %723 = vmatmul.mubr.bf16.gmra.mrb[0].mxu0 %v319
          %v724 = vpop.f32.mrb[0].mxu0
          %v725 = vadd.f32 0.0, %v724
          %v726 = vpop.f32.mrb[0].mxu0
          %v727 = vpop.f32.mrb[0].mxu0
          %v728 = vadd.f32 0.0, %v727
          %v729 = vpop.f32.mrb[0].mxu0
          %730 = vmatprep.mubr.bf16.mxu0 %v324
          %731 = vmatmul.mubr.bf16.gmra.mrb[0].mxu0 %v323
          %v732 = vpop.f32.mrb[0].mxu0
          %v733 = vadd.f32 0.0, %v732
          %v734 = vpop.f32.mrb[0].mxu0
          %v735 = vpop.f32.mrb[0].mxu0
          %v736 = vadd.f32 0.0, %v735
          %v737 = vpop.f32.mrb[0].mxu0
          %738 = vmatprep.mubr.bf16.mxu0 %v328
          %739 = vmatmul.mubr.bf16.gmra.mrb[0].mxu0 %v327
          %v740 = vpop.f32.mrb[0].mxu0
          %v741 = vadd.f32 0.0, %v740
          %v742 = vpop.f32.mrb[0].mxu0
          %v743 = vpop.f32.mrb[0].mxu0
          %v744 = vadd.f32 0.0, %v743
          %v745 = vpop.f32.mrb[0].mxu0
          %746 = vmatprep.mubr.bf16.mxu0 %v332
          %747 = vmatmul.mubr.bf16.gmra.mrb[0].mxu0 %v331
          %v748 = vpop.f32.mrb[0].mxu0
          %v749 = vadd.f32 0.0, %v748
          %v750 = vpop.f32.mrb[0].mxu0
          %v751 = vpop.f32.mrb[0].mxu0
          %v752 = vadd.f32 0.0, %v751
          %v753 = vpop.f32.mrb[0].mxu0
          %754 = vdwg.mxu0
          %755 = vmatprep.subr.bf16.mxu0 0
          %756 = vmatpush1.bf16.msra.mxu0 %v546
          %757 = vmatprep.subr.bf16.mxu0 0
          %758 = vmatpush1.bf16.msra.mxu0 %v547
          %759 = vmatprep.subr.bf16.mxu0 0
          %760 = vmatpush1.bf16.msra.mxu0 %v548
          %761 = vmatprep.subr.bf16.mxu0 0
          %762 = vmatpush1.bf16.msra.mxu0 %v549
          %763 = vmatprep.subr.bf16.mxu0 0
          %764 = vmatpush1.bf16.msra.mxu0 %v550
          %765 = vmatprep.subr.bf16.mxu0 0
          %766 = vmatpush1.bf16.msra.mxu0 %v551
          %767 = vmatprep.subr.bf16.mxu0 0
          %768 = vmatpush1.bf16.msra.mxu0 %v552
          %769 = vmatprep.subr.bf16.mxu0 0
          %770 = vmatpush1.bf16.msra.mxu0 %v553
          %771 = vmatprep.subr.bf16.mxu0 0
          %772 = vmatpush1.bf16.msra.mxu0 %v554
          %773 = vmatprep.subr.bf16.mxu0 0
          %774 = vmatpush1.bf16.msra.mxu0 %v555
          %775 = vmatprep.subr.bf16.mxu0 0
          %776 = vmatpush1.bf16.msra.mxu0 %v556
          %777 = vmatprep.subr.bf16.mxu0 0
          %778 = vmatpush1.bf16.msra.mxu0 %v557
          %779 = vmatprep.subr.bf16.mxu0 0
          %780 = vmatpush1.bf16.msra.mxu0 %v558
          %781 = vmatprep.subr.bf16.mxu0 0
          %782 = vmatpush1.bf16.msra.mxu0 %v559
          %783 = vmatprep.subr.bf16.mxu0 0
          %784 = vmatpush1.bf16.msra.mxu0 %v560
          %785 = vmatprep.subr.bf16.mxu0 0
          %786 = vmatpush1.bf16.msra.mxu0 %v561
          %787 = vmatprep.mubr.bf16.mxu0 %v274
          %788 = vmatmul.mubr.bf16.gmra.mrb[0].mxu0 %v273
          %v789 = vpop.f32.mrb[0].mxu0
          %v790 = vadd.f32 %v629, %v789
          %v791 = vpop.f32.mrb[0].mxu0
          %v792 = vpop.f32.mrb[0].mxu0
          %v793 = vadd.f32 %v632, %v792
          %v794 = vpop.f32.mrb[0].mxu0
          %795 = vmatprep.mubr.bf16.mxu0 %v278
          %796 = vmatmul.mubr.bf16.gmra.mrb[0].mxu0 %v277
          %v797 = vpop.f32.mrb[0].mxu0
          %v798 = vadd.f32 %v637, %v797
          %v799 = vpop.f32.mrb[0].mxu0
          %v800 = vpop.f32.mrb[0].mxu0
          %v801 = vadd.f32 %v640, %v800
          %v802 = vpop.f32.mrb[0].mxu0
          %803 = vmatprep.mubr.bf16.mxu0 %v282
          %804 = vmatmul.mubr.bf16.gmra.mrb[0].mxu0 %v281
          %v805 = vpop.f32.mrb[0].mxu0
          %v806 = vadd.f32 %v645, %v805
          %v807 = vpop.f32.mrb[0].mxu0
          %v808 = vpop.f32.mrb[0].mxu0
          %v809 = vadd.f32 %v648, %v808
          %v810 = vpop.f32.mrb[0].mxu0
          %811 = vmatprep.mubr.bf16.mxu0 %v286
          %812 = vmatmul.mubr.bf16.gmra.mrb[0].mxu0 %v285
          %v813 = vpop.f32.mrb[0].mxu0
          %v814 = vadd.f32 %v653, %v813
          %v815 = vpop.f32.mrb[0].mxu0
          %v816 = vpop.f32.mrb[0].mxu0
          %v817 = vadd.f32 %v656, %v816
          %v818 = vpop.f32.mrb[0].mxu0
          %819 = vmatprep.mubr.bf16.mxu0 %v290
          %820 = vmatmul.mubr.bf16.gmra.mrb[0].mxu0 %v289
          %v821 = vpop.f32.mrb[0].mxu0
          %v822 = vadd.f32 %v661, %v821
          %v823 = vpop.f32.mrb[0].mxu0
          %v824 = vpop.f32.mrb[0].mxu0
          %v825 = vadd.f32 %v664, %v824
          %v826 = vpop.f32.mrb[0].mxu0
          %827 = vmatprep.mubr.bf16.mxu0 %v294
          %828 = vmatmul.mubr.bf16.gmra.mrb[0].mxu0 %v293
          %v829 = vpop.f32.mrb[0].mxu0
          %v830 = vadd.f32 %v669, %v829
          %v831 = vpop.f32.mrb[0].mxu0
          %v832 = vpop.f32.mrb[0].mxu0
          %v833 = vadd.f32 %v672, %v832
          %v834 = vpop.f32.mrb[0].mxu0
          %835 = vmatprep.mubr.bf16.mxu0 %v298
          %836 = vmatmul.mubr.bf16.gmra.mrb[0].mxu0 %v297
          %v837 = vpop.f32.mrb[0].mxu0
          %v838 = vadd.f32 %v677, %v837
          %v839 = vpop.f32.mrb[0].mxu0
          %v840 = vpop.f32.mrb[0].mxu0
          %v841 = vadd.f32 %v680, %v840
          %v842 = vpop.f32.mrb[0].mxu0
          %843 = vmatprep.mubr.bf16.mxu0 %v302
          %844 = vmatmul.mubr.bf16.gmra.mrb[0].mxu0 %v301
          %v845 = vpop.f32.mrb[0].mxu0
          %v846 = vadd.f32 %v685, %v845
          %v847 = vpop.f32.mrb[0].mxu0
          %v848 = vpop.f32.mrb[0].mxu0
          %v849 = vadd.f32 %v688, %v848
          %v850 = vpop.f32.mrb[0].mxu0
          %851 = vmatprep.mubr.bf16.mxu0 %v306
          %852 = vmatmul.mubr.bf16.gmra.mrb[0].mxu0 %v305
          %v853 = vpop.f32.mrb[0].mxu0
          %v854 = vadd.f32 %v693, %v853
          %v855 = vpop.f32.mrb[0].mxu0
          %v856 = vpop.f32.mrb[0].mxu0
          %v857 = vadd.f32 %v696, %v856
          %v858 = vpop.f32.mrb[0].mxu0
          %859 = vmatprep.mubr.bf16.mxu0 %v310
          %860 = vmatmul.mubr.bf16.gmra.mrb[0].mxu0 %v309
          %v861 = vpop.f32.mrb[0].mxu0
          %v862 = vadd.f32 %v701, %v861
          %v863 = vpop.f32.mrb[0].mxu0
          %v864 = vpop.f32.mrb[0].mxu0
          %v865 = vadd.f32 %v704, %v864
          %v866 = vpop.f32.mrb[0].mxu0
          %867 = vmatprep.mubr.bf16.mxu0 %v314
          %868 = vmatmul.mubr.bf16.gmra.mrb[0].mxu0 %v313
          %v869 = vpop.f32.mrb[0].mxu0
          %v870 = vadd.f32 %v709, %v869
          %v871 = vpop.f32.mrb[0].mxu0
          %v872 = vpop.f32.mrb[0].mxu0
          %v873 = vadd.f32 %v712, %v872
          %v874 = vpop.f32.mrb[0].mxu0
          %875 = vmatprep.mubr.bf16.mxu0 %v318
          %876 = vmatmul.mubr.bf16.gmra.mrb[0].mxu0 %v317
          %v877 = vpop.f32.mrb[0].mxu0
          %v878 = vadd.f32 %v717, %v877
          %v879 = vpop.f32.mrb[0].mxu0
          %v880 = vpop.f32.mrb[0].mxu0
          %v881 = vadd.f32 %v720, %v880
          %v882 = vpop.f32.mrb[0].mxu0
          %883 = vmatprep.mubr.bf16.mxu0 %v322
          %884 = vmatmul.mubr.bf16.gmra.mrb[0].mxu0 %v321
          %v885 = vpop.f32.mrb[0].mxu0
          %v886 = vadd.f32 %v725, %v885
          %v887 = vpop.f32.mrb[0].mxu0
          %v888 = vpop.f32.mrb[0].mxu0
          %v889 = vadd.f32 %v728, %v888
          %v890 = vpop.f32.mrb[0].mxu0
          %891 = vmatprep.mubr.bf16.mxu0 %v326
          %892 = vmatmul.mubr.bf16.gmra.mrb[0].mxu0 %v325
          %v893 = vpop.f32.mrb[0].mxu0
          %v894 = vadd.f32 %v733, %v893
          %v895 = vpop.f32.mrb[0].mxu0
          %v896 = vpop.f32.mrb[0].mxu0
          %v897 = vadd.f32 %v736, %v896
          %v898 = vpop.f32.mrb[0].mxu0
          %899 = vmatprep.mubr.bf16.mxu0 %v330
          %900 = vmatmul.mubr.bf16.gmra.mrb[0].mxu0 %v329
          %v901 = vpop.f32.mrb[0].mxu0
          %v902 = vadd.f32 %v741, %v901
          %v903 = vpop.f32.mrb[0].mxu0
          %v904 = vpop.f32.mrb[0].mxu0
          %v905 = vadd.f32 %v744, %v904
          %v906 = vpop.f32.mrb[0].mxu0
          %907 = vmatprep.mubr.bf16.mxu0 %v334
          %908 = vmatmul.mubr.bf16.gmra.mrb[0].mxu0 %v333
          %v909 = vpop.f32.mrb[0].mxu0
          %v910 = vadd.f32 %v749, %v909
          %v911 = vpop.f32.mrb[0].mxu0
          %v912 = vpop.f32.mrb[0].mxu0
          %v913 = vadd.f32 %v752, %v912
          %v914 = vpop.f32.mrb[0].mxu0
          %915 = vdwg.mxu0
          %916 = vst [vmem:[#allocation5] sm:$0xff] %v790
          %917 = vst [vmem:[#allocation5 + $0x8] sm:$0xff] %v793
          %918 = vst [vmem:[#allocation5 + $0x10] sm:$0xff] %v798
          %919 = vst [vmem:[#allocation5 + $0x18] sm:$0xff] %v801
          %920 = vst [vmem:[#allocation5 + $0x20] sm:$0xff] %v806
          %921 = vst [vmem:[#allocation5 + $0x28] sm:$0xff] %v809
          %922 = vst [vmem:[#allocation5 + $0x30] sm:$0xff] %v814
          %923 = vst [vmem:[#allocation5 + $0x38] sm:$0xff] %v817
          %924 = vst [vmem:[#allocation5 + $0x40] sm:$0xff] %v822
          %925 = vst [vmem:[#allocation5 + $0x48] sm:$0xff] %v825
          %926 = vst [vmem:[#allocation5 + $0x50] sm:$0xff] %v830
          %927 = vst [vmem:[#allocation5 + $0x58] sm:$0xff] %v833
          %928 = vst [vmem:[#allocation5 + $0x60] sm:$0xff] %v838
          %929 = vst [vmem:[#allocation5 + $0x68] sm:$0xff] %v841
          %930 = vst [vmem:[#allocation5 + $0x70] sm:$0xff] %v846
          %931 = vst [vmem:[#allocation5 + $0x78] sm:$0xff] %v849
          %932 = vst [vmem:[#allocation5 + $0x80] sm:$0xff] %v854
          %933 = vst [vmem:[#allocation5 + $0x88] sm:$0xff] %v857
          %934 = vst [vmem:[#allocation5 + $0x90] sm:$0xff] %v862
          %935 = vst [vmem:[#allocation5 + $0x98] sm:$0xff] %v865
          %936 = vst [vmem:[#allocation5 + $0xa0] sm:$0xff] %v870
          %937 = vst [vmem:[#allocation5 + $0xa8] sm:$0xff] %v873
          %938 = vst [vmem:[#allocation5 + $0xb0] sm:$0xff] %v878
          %939 = vst [vmem:[#allocation5 + $0xb8] sm:$0xff] %v881
          %940 = vst [vmem:[#allocation5 + $0xc0] sm:$0xff] %v886
          %941 = vst [vmem:[#allocation5 + $0xc8] sm:$0xff] %v889
          %942 = vst [vmem:[#allocation5 + $0xd0] sm:$0xff] %v894
          %943 = vst [vmem:[#allocation5 + $0xd8] sm:$0xff] %v897
          %944 = vst [vmem:[#allocation5 + $0xe0] sm:$0xff] %v902
          %945 = vst [vmem:[#allocation5 + $0xe8] sm:$0xff] %v905
          %946 = vst [vmem:[#allocation5 + $0xf0] sm:$0xff] %v910
          %947 = vst [vmem:[#allocation5 + $0xf8] sm:$0xff] %v913
        $region48: #{_gcn3_forward_fused.1} parent=31 // pred_fallthru
          _
        %p948 = scmp.eq.s32.totalorder %s24, 1
        // Predicated region
        $region49: #{_gcn3_forward_fused.1} parent=31 // pred_check
          %p949 = pneg %p948
        $region50: #{_gcn3_forward_fused.1} parent=31 // pred_check_branch
          %951 = sbr.rel (%p949) target = $region52
        $region51: #{_gcn3_forward_fused.1} parent=31 // pred_region
          %v952 = vld [vmem:[#allocation3] sm:$0xff]
          %v953 = vld [vmem:[#allocation3 + $0x8] sm:$0xff]
          %v954 = vld [vmem:[#allocation3 + $0x10] sm:$0xff]
          %v955 = vld [vmem:[#allocation3 + $0x18] sm:$0xff]
          %v956 = vld [vmem:[#allocation3 + $0x20] sm:$0xff]
          %v957 = vld [vmem:[#allocation3 + $0x28] sm:$0xff]
          %v958 = vld [vmem:[#allocation3 + $0x30] sm:$0xff]
          %v959 = vld [vmem:[#allocation3 + $0x38] sm:$0xff]
          %v960 = vld [vmem:[#allocation3 + $0x40] sm:$0xff]
          %v961 = vld [vmem:[#allocation3 + $0x48] sm:$0xff]
          %v962 = vld [vmem:[#allocation3 + $0x50] sm:$0xff]
          %v963 = vld [vmem:[#allocation3 + $0x58] sm:$0xff]
          %v964 = vld [vmem:[#allocation3 + $0x60] sm:$0xff]
          %v965 = vld [vmem:[#allocation3 + $0x68] sm:$0xff]
          %v966 = vld [vmem:[#allocation3 + $0x70] sm:$0xff]
          %v967 = vld [vmem:[#allocation3 + $0x78] sm:$0xff]
          %v968 = vld [vmem:[#allocation3 + $0x80] sm:$0xff]
          %v969 = vld [vmem:[#allocation3 + $0x88] sm:$0xff]
          %v970 = vld [vmem:[#allocation3 + $0x90] sm:$0xff]
          %v971 = vld [vmem:[#allocation3 + $0x98] sm:$0xff]
          %v972 = vld [vmem:[#allocation3 + $0xa0] sm:$0xff]
          %v973 = vld [vmem:[#allocation3 + $0xa8] sm:$0xff]
          %v974 = vld [vmem:[#allocation3 + $0xb0] sm:$0xff]
          %v975 = vld [vmem:[#allocation3 + $0xb8] sm:$0xff]
          %v976 = vld [vmem:[#allocation3 + $0xc0] sm:$0xff]
          %v977 = vld [vmem:[#allocation3 + $0xc8] sm:$0xff]
          %v978 = vld [vmem:[#allocation3 + $0xd0] sm:$0xff]
          %v979 = vld [vmem:[#allocation3 + $0xd8] sm:$0xff]
          %v980 = vld [vmem:[#allocation3 + $0xe0] sm:$0xff]
          %v981 = vld [vmem:[#allocation3 + $0xe8] sm:$0xff]
          %v982 = vld [vmem:[#allocation3 + $0xf0] sm:$0xff]
          %v983 = vld [vmem:[#allocation3 + $0xf8] sm:$0xff]
          %984 = vmatprep.subr.bf16.mxu0 0
          %985 = vmatpush1.bf16.msra.mxu0 %v952
          %986 = vmatprep.subr.bf16.mxu0 0
          %987 = vmatpush1.bf16.msra.mxu0 %v953
          %988 = vmatprep.subr.bf16.mxu0 0
          %989 = vmatpush1.bf16.msra.mxu0 %v954
          %990 = vmatprep.subr.bf16.mxu0 0
          %991 = vmatpush1.bf16.msra.mxu0 %v955
          %992 = vmatprep.subr.bf16.mxu0 0
          %993 = vmatpush1.bf16.msra.mxu0 %v956
          %994 = vmatprep.subr.bf16.mxu0 0
          %995 = vmatpush1.bf16.msra.mxu0 %v957
          %996 = vmatprep.subr.bf16.mxu0 0
          %997 = vmatpush1.bf16.msra.mxu0 %v958
          %998 = vmatprep.subr.bf16.mxu0 0
          %999 = vmatpush1.bf16.msra.mxu0 %v959
          %1000 = vmatprep.subr.bf16.mxu0 0
          %1001 = vmatpush1.bf16.msra.mxu0 %v960
          %1002 = vmatprep.subr.bf16.mxu0 0
          %1003 = vmatpush1.bf16.msra.mxu0 %v961
          %1004 = vmatprep.subr.bf16.mxu0 0
          %1005 = vmatpush1.bf16.msra.mxu0 %v962
          %1006 = vmatprep.subr.bf16.mxu0 0
          %1007 = vmatpush1.bf16.msra.mxu0 %v963
          %1008 = vmatprep.subr.bf16.mxu0 0
          %1009 = vmatpush1.bf16.msra.mxu0 %v964
          %1010 = vmatprep.subr.bf16.mxu0 0
          %1011 = vmatpush1.bf16.msra.mxu0 %v965
          %1012 = vmatprep.subr.bf16.mxu0 0
          %1013 = vmatpush1.bf16.msra.mxu0 %v966
          %1014 = vmatprep.subr.bf16.mxu0 0
          %1015 = vmatpush1.bf16.msra.mxu0 %v967
          %1016 = vmatprep.mubr.bf16.mxu0 %v272
          %1017 = vmatmul.mubr.bf16.gmra.mrb[0].mxu0 %v271
          %v1018 = vpop.f32.mrb[0].mxu0
          %v1019 = vadd.f32 0.0, %v1018
          %v1020 = vpop.f32.mrb[0].mxu0
          %v1021 = vpop.f32.mrb[0].mxu0
          %v1022 = vadd.f32 0.0, %v1021
          %v1023 = vpop.f32.mrb[0].mxu0
          %1024 = vmatprep.mubr.bf16.mxu0 %v276
          %1025 = vmatmul.mubr.bf16.gmra.mrb[0].mxu0 %v275
          %v1026 = vpop.f32.mrb[0].mxu0
          %v1027 = vadd.f32 0.0, %v1026
          %v1028 = vpop.f32.mrb[0].mxu0
          %v1029 = vpop.f32.mrb[0].mxu0
          %v1030 = vadd.f32 0.0, %v1029
          %v1031 = vpop.f32.mrb[0].mxu0
          %1032 = vmatprep.mubr.bf16.mxu0 %v280
          %1033 = vmatmul.mubr.bf16.gmra.mrb[0].mxu0 %v279
          %v1034 = vpop.f32.mrb[0].mxu0
          %v1035 = vadd.f32 0.0, %v1034
          %v1036 = vpop.f32.mrb[0].mxu0
          %v1037 = vpop.f32.mrb[0].mxu0
          %v1038 = vadd.f32 0.0, %v1037
          %v1039 = vpop.f32.mrb[0].mxu0
          %1040 = vmatprep.mubr.bf16.mxu0 %v284
          %1041 = vmatmul.mubr.bf16.gmra.mrb[0].mxu0 %v283
          %v1042 = vpop.f32.mrb[0].mxu0
          %v1043 = vadd.f32 0.0, %v1042
          %v1044 = vpop.f32.mrb[0].mxu0
          %v1045 = vpop.f32.mrb[0].mxu0
          %v1046 = vadd.f32 0.0, %v1045
          %v1047 = vpop.f32.mrb[0].mxu0
          %1048 = vmatprep.mubr.bf16.mxu0 %v288
          %1049 = vmatmul.mubr.bf16.gmra.mrb[0].mxu0 %v287
          %v1050 = vpop.f32.mrb[0].mxu0
          %v1051 = vadd.f32 0.0, %v1050
          %v1052 = vpop.f32.mrb[0].mxu0
          %v1053 = vpop.f32.mrb[0].mxu0
          %v1054 = vadd.f32 0.0, %v1053
          %v1055 = vpop.f32.mrb[0].mxu0
          %1056 = vmatprep.mubr.bf16.mxu0 %v292
          %1057 = vmatmul.mubr.bf16.gmra.mrb[0].mxu0 %v291
          %v1058 = vpop.f32.mrb[0].mxu0
          %v1059 = vadd.f32 0.0, %v1058
          %v1060 = vpop.f32.mrb[0].mxu0
          %v1061 = vpop.f32.mrb[0].mxu0
          %v1062 = vadd.f32 0.0, %v1061
          %v1063 = vpop.f32.mrb[0].mxu0
          %1064 = vmatprep.mubr.bf16.mxu0 %v296
          %1065 = vmatmul.mubr.bf16.gmra.mrb[0].mxu0 %v295
          %v1066 = vpop.f32.mrb[0].mxu0
          %v1067 = vadd.f32 0.0, %v1066
          %v1068 = vpop.f32.mrb[0].mxu0
          %v1069 = vpop.f32.mrb[0].mxu0
          %v1070 = vadd.f32 0.0, %v1069
          %v1071 = vpop.f32.mrb[0].mxu0
          %1072 = vmatprep.mubr.bf16.mxu0 %v300
          %1073 = vmatmul.mubr.bf16.gmra.mrb[0].mxu0 %v299
          %v1074 = vpop.f32.mrb[0].mxu0
          %v1075 = vadd.f32 0.0, %v1074
          %v1076 = vpop.f32.mrb[0].mxu0
          %v1077 = vpop.f32.mrb[0].mxu0
          %v1078 = vadd.f32 0.0, %v1077
          %v1079 = vpop.f32.mrb[0].mxu0
          %1080 = vmatprep.mubr.bf16.mxu0 %v304
          %1081 = vmatmul.mubr.bf16.gmra.mrb[0].mxu0 %v303
          %v1082 = vpop.f32.mrb[0].mxu0
          %v1083 = vadd.f32 0.0, %v1082
          %v1084 = vpop.f32.mrb[0].mxu0
          %v1085 = vpop.f32.mrb[0].mxu0
          %v1086 = vadd.f32 0.0, %v1085
          %v1087 = vpop.f32.mrb[0].mxu0
          %1088 = vmatprep.mubr.bf16.mxu0 %v308
          %1089 = vmatmul.mubr.bf16.gmra.mrb[0].mxu0 %v307
          %v1090 = vpop.f32.mrb[0].mxu0
          %v1091 = vadd.f32 0.0, %v1090
          %v1092 = vpop.f32.mrb[0].mxu0
          %v1093 = vpop.f32.mrb[0].mxu0
          %v1094 = vadd.f32 0.0, %v1093
          %v1095 = vpop.f32.mrb[0].mxu0
          %1096 = vmatprep.mubr.bf16.mxu0 %v312
          %1097 = vmatmul.mubr.bf16.gmra.mrb[0].mxu0 %v311
          %v1098 = vpop.f32.mrb[0].mxu0
          %v1099 = vadd.f32 0.0, %v1098
          %v1100 = vpop.f32.mrb[0].mxu0
          %v1101 = vpop.f32.mrb[0].mxu0
          %v1102 = vadd.f32 0.0, %v1101
          %v1103 = vpop.f32.mrb[0].mxu0
          %1104 = vmatprep.mubr.bf16.mxu0 %v316
          %1105 = vmatmul.mubr.bf16.gmra.mrb[0].mxu0 %v315
          %v1106 = vpop.f32.mrb[0].mxu0
          %v1107 = vadd.f32 0.0, %v1106
          %v1108 = vpop.f32.mrb[0].mxu0
          %v1109 = vpop.f32.mrb[0].mxu0
          %v1110 = vadd.f32 0.0, %v1109
          %v1111 = vpop.f32.mrb[0].mxu0
          %1112 = vmatprep.mubr.bf16.mxu0 %v320
          %1113 = vmatmul.mubr.bf16.gmra.mrb[0].mxu0 %v319
          %v1114 = vpop.f32.mrb[0].mxu0
          %v1115 = vadd.f32 0.0, %v1114
          %v1116 = vpop.f32.mrb[0].mxu0
          %v1117 = vpop.f32.mrb[0].mxu0
          %v1118 = vadd.f32 0.0, %v1117
          %v1119 = vpop.f32.mrb[0].mxu0
          %1120 = vmatprep.mubr.bf16.mxu0 %v324
          %1121 = vmatmul.mubr.bf16.gmra.mrb[0].mxu0 %v323
          %v1122 = vpop.f32.mrb[0].mxu0
          %v1123 = vadd.f32 0.0, %v1122
          %v1124 = vpop.f32.mrb[0].mxu0
          %v1125 = vpop.f32.mrb[0].mxu0
          %v1126 = vadd.f32 0.0, %v1125
          %v1127 = vpop.f32.mrb[0].mxu0
          %1128 = vmatprep.mubr.bf16.mxu0 %v328
          %1129 = vmatmul.mubr.bf16.gmra.mrb[0].mxu0 %v327
          %v1130 = vpop.f32.mrb[0].mxu0
          %v1131 = vadd.f32 0.0, %v1130
          %v1132 = vpop.f32.mrb[0].mxu0
          %v1133 = vpop.f32.mrb[0].mxu0
          %v1134 = vadd.f32 0.0, %v1133
          %v1135 = vpop.f32.mrb[0].mxu0
          %1136 = vmatprep.mubr.bf16.mxu0 %v332
          %1137 = vmatmul.mubr.bf16.gmra.mrb[0].mxu0 %v331
          %v1138 = vpop.f32.mrb[0].mxu0
          %v1139 = vadd.f32 0.0, %v1138
          %v1140 = vpop.f32.mrb[0].mxu0
          %v1141 = vpop.f32.mrb[0].mxu0
          %v1142 = vadd.f32 0.0, %v1141
          %v1143 = vpop.f32.mrb[0].mxu0
          %1144 = vdwg.mxu0
          %1145 = vmatprep.subr.bf16.mxu0 0
          %1146 = vmatpush1.bf16.msra.mxu0 %v968
          %1147 = vmatprep.subr.bf16.mxu0 0
          %1148 = vmatpush1.bf16.msra.mxu0 %v969
          %1149 = vmatprep.subr.bf16.mxu0 0
          %1150 = vmatpush1.bf16.msra.mxu0 %v970
          %1151 = vmatprep.subr.bf16.mxu0 0
          %1152 = vmatpush1.bf16.msra.mxu0 %v971
          %1153 = vmatprep.subr.bf16.mxu0 0
          %1154 = vmatpush1.bf16.msra.mxu0 %v972
          %1155 = vmatprep.subr.bf16.mxu0 0
          %1156 = vmatpush1.bf16.msra.mxu0 %v973
          %1157 = vmatprep.subr.bf16.mxu0 0
          %1158 = vmatpush1.bf16.msra.mxu0 %v974
          %1159 = vmatprep.subr.bf16.mxu0 0
          %1160 = vmatpush1.bf16.msra.mxu0 %v975
          %1161 = vmatprep.subr.bf16.mxu0 0
          %1162 = vmatpush1.bf16.msra.mxu0 %v976
          %1163 = vmatprep.subr.bf16.mxu0 0
          %1164 = vmatpush1.bf16.msra.mxu0 %v977
          %1165 = vmatprep.subr.bf16.mxu0 0
          %1166 = vmatpush1.bf16.msra.mxu0 %v978
          %1167 = vmatprep.subr.bf16.mxu0 0
          %1168 = vmatpush1.bf16.msra.mxu0 %v979
          %1169 = vmatprep.subr.bf16.mxu0 0
          %1170 = vmatpush1.bf16.msra.mxu0 %v980
          %1171 = vmatprep.subr.bf16.mxu0 0
          %1172 = vmatpush1.bf16.msra.mxu0 %v981
          %1173 = vmatprep.subr.bf16.mxu0 0
          %1174 = vmatpush1.bf16.msra.mxu0 %v982
          %1175 = vmatprep.subr.bf16.mxu0 0
          %1176 = vmatpush1.bf16.msra.mxu0 %v983
          %1177 = vmatprep.mubr.bf16.mxu0 %v274
          %1178 = vmatmul.mubr.bf16.gmra.mrb[0].mxu0 %v273
          %v1179 = vpop.f32.mrb[0].mxu0
          %v1180 = vadd.f32 %v1019, %v1179
          %v1181 = vpop.f32.mrb[0].mxu0
          %v1182 = vpop.f32.mrb[0].mxu0
          %v1183 = vadd.f32 %v1022, %v1182
          %v1184 = vpop.f32.mrb[0].mxu0
          %1185 = vmatprep.mubr.bf16.mxu0 %v278
          %1186 = vmatmul.mubr.bf16.gmra.mrb[0].mxu0 %v277
          %v1187 = vpop.f32.mrb[0].mxu0
          %v1188 = vadd.f32 %v1027, %v1187
          %v1189 = vpop.f32.mrb[0].mxu0
          %v1190 = vpop.f32.mrb[0].mxu0
          %v1191 = vadd.f32 %v1030, %v1190
          %v1192 = vpop.f32.mrb[0].mxu0
          %1193 = vmatprep.mubr.bf16.mxu0 %v282
          %1194 = vmatmul.mubr.bf16.gmra.mrb[0].mxu0 %v281
          %v1195 = vpop.f32.mrb[0].mxu0
          %v1196 = vadd.f32 %v1035, %v1195
          %v1197 = vpop.f32.mrb[0].mxu0
          %v1198 = vpop.f32.mrb[0].mxu0
          %v1199 = vadd.f32 %v1038, %v1198
          %v1200 = vpop.f32.mrb[0].mxu0
          %1201 = vmatprep.mubr.bf16.mxu0 %v286
          %1202 = vmatmul.mubr.bf16.gmra.mrb[0].mxu0 %v285
          %v1203 = vpop.f32.mrb[0].mxu0
          %v1204 = vadd.f32 %v1043, %v1203
          %v1205 = vpop.f32.mrb[0].mxu0
          %v1206 = vpop.f32.mrb[0].mxu0
          %v1207 = vadd.f32 %v1046, %v1206
          %v1208 = vpop.f32.mrb[0].mxu0
          %1209 = vmatprep.mubr.bf16.mxu0 %v290
          %1210 = vmatmul.mubr.bf16.gmra.mrb[0].mxu0 %v289
          %v1211 = vpop.f32.mrb[0].mxu0
          %v1212 = vadd.f32 %v1051, %v1211
          %v1213 = vpop.f32.mrb[0].mxu0
          %v1214 = vpop.f32.mrb[0].mxu0
          %v1215 = vadd.f32 %v1054, %v1214
          %v1216 = vpop.f32.mrb[0].mxu0
          %1217 = vmatprep.mubr.bf16.mxu0 %v294
          %1218 = vmatmul.mubr.bf16.gmra.mrb[0].mxu0 %v293
          %v1219 = vpop.f32.mrb[0].mxu0
          %v1220 = vadd.f32 %v1059, %v1219
          %v1221 = vpop.f32.mrb[0].mxu0
          %v1222 = vpop.f32.mrb[0].mxu0
          %v1223 = vadd.f32 %v1062, %v1222
          %v1224 = vpop.f32.mrb[0].mxu0
          %1225 = vmatprep.mubr.bf16.mxu0 %v298
          %1226 = vmatmul.mubr.bf16.gmra.mrb[0].mxu0 %v297
          %v1227 = vpop.f32.mrb[0].mxu0
          %v1228 = vadd.f32 %v1067, %v1227
          %v1229 = vpop.f32.mrb[0].mxu0
          %v1230 = vpop.f32.mrb[0].mxu0
          %v1231 = vadd.f32 %v1070, %v1230
          %v1232 = vpop.f32.mrb[0].mxu0
          %1233 = vmatprep.mubr.bf16.mxu0 %v302
          %1234 = vmatmul.mubr.bf16.gmra.mrb[0].mxu0 %v301
          %v1235 = vpop.f32.mrb[0].mxu0
          %v1236 = vadd.f32 %v1075, %v1235
          %v1237 = vpop.f32.mrb[0].mxu0
          %v1238 = vpop.f32.mrb[0].mxu0
          %v1239 = vadd.f32 %v1078, %v1238
          %v1240 = vpop.f32.mrb[0].mxu0
          %1241 = vmatprep.mubr.bf16.mxu0 %v306
          %1242 = vmatmul.mubr.bf16.gmra.mrb[0].mxu0 %v305
          %v1243 = vpop.f32.mrb[0].mxu0
          %v1244 = vadd.f32 %v1083, %v1243
          %v1245 = vpop.f32.mrb[0].mxu0
          %v1246 = vpop.f32.mrb[0].mxu0
          %v1247 = vadd.f32 %v1086, %v1246
          %v1248 = vpop.f32.mrb[0].mxu0
          %1249 = vmatprep.mubr.bf16.mxu0 %v310
          %1250 = vmatmul.mubr.bf16.gmra.mrb[0].mxu0 %v309
          %v1251 = vpop.f32.mrb[0].mxu0
          %v1252 = vadd.f32 %v1091, %v1251
          %v1253 = vpop.f32.mrb[0].mxu0
          %v1254 = vpop.f32.mrb[0].mxu0
          %v1255 = vadd.f32 %v1094, %v1254
          %v1256 = vpop.f32.mrb[0].mxu0
          %1257 = vmatprep.mubr.bf16.mxu0 %v314
          %1258 = vmatmul.mubr.bf16.gmra.mrb[0].mxu0 %v313
          %v1259 = vpop.f32.mrb[0].mxu0
          %v1260 = vadd.f32 %v1099, %v1259
          %v1261 = vpop.f32.mrb[0].mxu0
          %v1262 = vpop.f32.mrb[0].mxu0
          %v1263 = vadd.f32 %v1102, %v1262
          %v1264 = vpop.f32.mrb[0].mxu0
          %1265 = vmatprep.mubr.bf16.mxu0 %v318
          %1266 = vmatmul.mubr.bf16.gmra.mrb[0].mxu0 %v317
          %v1267 = vpop.f32.mrb[0].mxu0
          %v1268 = vadd.f32 %v1107, %v1267
          %v1269 = vpop.f32.mrb[0].mxu0
          %v1270 = vpop.f32.mrb[0].mxu0
          %v1271 = vadd.f32 %v1110, %v1270
          %v1272 = vpop.f32.mrb[0].mxu0
          %1273 = vmatprep.mubr.bf16.mxu0 %v322
          %1274 = vmatmul.mubr.bf16.gmra.mrb[0].mxu0 %v321
          %v1275 = vpop.f32.mrb[0].mxu0
          %v1276 = vadd.f32 %v1115, %v1275
          %v1277 = vpop.f32.mrb[0].mxu0
          %v1278 = vpop.f32.mrb[0].mxu0
          %v1279 = vadd.f32 %v1118, %v1278
          %v1280 = vpop.f32.mrb[0].mxu0
          %1281 = vmatprep.mubr.bf16.mxu0 %v326
          %1282 = vmatmul.mubr.bf16.gmra.mrb[0].mxu0 %v325
          %v1283 = vpop.f32.mrb[0].mxu0
          %v1284 = vadd.f32 %v1123, %v1283
          %v1285 = vpop.f32.mrb[0].mxu0
          %v1286 = vpop.f32.mrb[0].mxu0
          %v1287 = vadd.f32 %v1126, %v1286
          %v1288 = vpop.f32.mrb[0].mxu0
          %1289 = vmatprep.mubr.bf16.mxu0 %v330
          %1290 = vmatmul.mubr.bf16.gmra.mrb[0].mxu0 %v329
          %v1291 = vpop.f32.mrb[0].mxu0
          %v1292 = vadd.f32 %v1131, %v1291
          %v1293 = vpop.f32.mrb[0].mxu0
          %v1294 = vpop.f32.mrb[0].mxu0
          %v1295 = vadd.f32 %v1134, %v1294
          %v1296 = vpop.f32.mrb[0].mxu0
          %1297 = vmatprep.mubr.bf16.mxu0 %v334
          %1298 = vmatmul.mubr.bf16.gmra.mrb[0].mxu0 %v333
          %v1299 = vpop.f32.mrb[0].mxu0
          %v1300 = vadd.f32 %v1139, %v1299
          %v1301 = vpop.f32.mrb[0].mxu0
          %v1302 = vpop.f32.mrb[0].mxu0
          %v1303 = vadd.f32 %v1142, %v1302
          %v1304 = vpop.f32.mrb[0].mxu0
          %1305 = vdwg.mxu0
          %1306 = vst [vmem:[#allocation5] sm:$0xff] %v1180
          %1307 = vst [vmem:[#allocation5 + $0x8] sm:$0xff] %v1183
          %1308 = vst [vmem:[#allocation5 + $0x10] sm:$0xff] %v1188
          %1309 = vst [vmem:[#allocation5 + $0x18] sm:$0xff] %v1191
          %1310 = vst [vmem:[#allocation5 + $0x20] sm:$0xff] %v1196
          %1311 = vst [vmem:[#allocation5 + $0x28] sm:$0xff] %v1199
          %1312 = vst [vmem:[#allocation5 + $0x30] sm:$0xff] %v1204
          %1313 = vst [vmem:[#allocation5 + $0x38] sm:$0xff] %v1207
          %1314 = vst [vmem:[#allocation5 + $0x40] sm:$0xff] %v1212
          %1315 = vst [vmem:[#allocation5 + $0x48] sm:$0xff] %v1215
          %1316 = vst [vmem:[#allocation5 + $0x50] sm:$0xff] %v1220
          %1317 = vst [vmem:[#allocation5 + $0x58] sm:$0xff] %v1223
          %1318 = vst [vmem:[#allocation5 + $0x60] sm:$0xff] %v1228
          %1319 = vst [vmem:[#allocation5 + $0x68] sm:$0xff] %v1231
          %1320 = vst [vmem:[#allocation5 + $0x70] sm:$0xff] %v1236
          %1321 = vst [vmem:[#allocation5 + $0x78] sm:$0xff] %v1239
          %1322 = vst [vmem:[#allocation5 + $0x80] sm:$0xff] %v1244
          %1323 = vst [vmem:[#allocation5 + $0x88] sm:$0xff] %v1247
          %1324 = vst [vmem:[#allocation5 + $0x90] sm:$0xff] %v1252
          %1325 = vst [vmem:[#allocation5 + $0x98] sm:$0xff] %v1255
          %1326 = vst [vmem:[#allocation5 + $0xa0] sm:$0xff] %v1260
          %1327 = vst [vmem:[#allocation5 + $0xa8] sm:$0xff] %v1263
          %1328 = vst [vmem:[#allocation5 + $0xb0] sm:$0xff] %v1268
          %1329 = vst [vmem:[#allocation5 + $0xb8] sm:$0xff] %v1271
          %1330 = vst [vmem:[#allocation5 + $0xc0] sm:$0xff] %v1276
          %1331 = vst [vmem:[#allocation5 + $0xc8] sm:$0xff] %v1279
          %1332 = vst [vmem:[#allocation5 + $0xd0] sm:$0xff] %v1284
          %1333 = vst [vmem:[#allocation5 + $0xd8] sm:$0xff] %v1287
          %1334 = vst [vmem:[#allocation5 + $0xe0] sm:$0xff] %v1292
          %1335 = vst [vmem:[#allocation5 + $0xe8] sm:$0xff] %v1295
          %1336 = vst [vmem:[#allocation5 + $0xf0] sm:$0xff] %v1300
          %1337 = vst [vmem:[#allocation5 + $0xf8] sm:$0xff] %v1303
        $region52: #{_gcn3_forward_fused.1} parent=31 // pred_fallthru
          _
        %p1338 = scmp.eq.s32.totalorder %s24, 2
        // Predicated region
        $region53: #{_gcn3_forward_fused.1} parent=31 // pred_check
          %p1339 = pneg %p1338
        $region54: #{_gcn3_forward_fused.1} parent=31 // pred_check_branch
          %1341 = sbr.rel (%p1339) target = $region56
        $region55: #{_gcn3_forward_fused.1} parent=31 // pred_region
          %v1342 = vld [vmem:[#allocation4] sm:$0xff]
          %v1343 = vld [vmem:[#allocation4 + $0x8] sm:$0xff]
          %v1344 = vld [vmem:[#allocation4 + $0x10] sm:$0xff]
          %v1345 = vld [vmem:[#allocation4 + $0x18] sm:$0xff]
          %v1346 = vld [vmem:[#allocation4 + $0x20] sm:$0xff]
          %v1347 = vld [vmem:[#allocation4 + $0x28] sm:$0xff]
          %v1348 = vld [vmem:[#allocation4 + $0x30] sm:$0xff]
          %v1349 = vld [vmem:[#allocation4 + $0x38] sm:$0xff]
          %v1350 = vld [vmem:[#allocation4 + $0x40] sm:$0xff]
          %v1351 = vld [vmem:[#allocation4 + $0x48] sm:$0xff]
          %v1352 = vld [vmem:[#allocation4 + $0x50] sm:$0xff]
          %v1353 = vld [vmem:[#allocation4 + $0x58] sm:$0xff]
          %v1354 = vld [vmem:[#allocation4 + $0x60] sm:$0xff]
          %v1355 = vld [vmem:[#allocation4 + $0x68] sm:$0xff]
          %v1356 = vld [vmem:[#allocation4 + $0x70] sm:$0xff]
          %v1357 = vld [vmem:[#allocation4 + $0x78] sm:$0xff]
          %v1358 = vld [vmem:[#allocation4 + $0x80] sm:$0xff]
          %v1359 = vld [vmem:[#allocation4 + $0x88] sm:$0xff]
          %v1360 = vld [vmem:[#allocation4 + $0x90] sm:$0xff]
          %v1361 = vld [vmem:[#allocation4 + $0x98] sm:$0xff]
          %v1362 = vld [vmem:[#allocation4 + $0xa0] sm:$0xff]
          %v1363 = vld [vmem:[#allocation4 + $0xa8] sm:$0xff]
          %v1364 = vld [vmem:[#allocation4 + $0xb0] sm:$0xff]
          %v1365 = vld [vmem:[#allocation4 + $0xb8] sm:$0xff]
          %v1366 = vld [vmem:[#allocation4 + $0xc0] sm:$0xff]
          %v1367 = vld [vmem:[#allocation4 + $0xc8] sm:$0xff]
          %v1368 = vld [vmem:[#allocation4 + $0xd0] sm:$0xff]
          %v1369 = vld [vmem:[#allocation4 + $0xd8] sm:$0xff]
          %v1370 = vld [vmem:[#allocation4 + $0xe0] sm:$0xff]
          %v1371 = vld [vmem:[#allocation4 + $0xe8] sm:$0xff]
          %v1372 = vld [vmem:[#allocation4 + $0xf0] sm:$0xff]
          %v1373 = vld [vmem:[#allocation4 + $0xf8] sm:$0xff]
          %1374 = vmatprep.subr.bf16.mxu0 0
          %1375 = vmatpush1.bf16.msra.mxu0 %v1342
          %1376 = vmatprep.subr.bf16.mxu0 0
          %1377 = vmatpush1.bf16.msra.mxu0 %v1343
          %1378 = vmatprep.subr.bf16.mxu0 0
          %1379 = vmatpush1.bf16.msra.mxu0 %v1344
          %1380 = vmatprep.subr.bf16.mxu0 0
          %1381 = vmatpush1.bf16.msra.mxu0 %v1345
          %1382 = vmatprep.subr.bf16.mxu0 0
          %1383 = vmatpush1.bf16.msra.mxu0 %v1346
          %1384 = vmatprep.subr.bf16.mxu0 0
          %1385 = vmatpush1.bf16.msra.mxu0 %v1347
          %1386 = vmatprep.subr.bf16.mxu0 0
          %1387 = vmatpush1.bf16.msra.mxu0 %v1348
          %1388 = vmatprep.subr.bf16.mxu0 0
          %1389 = vmatpush1.bf16.msra.mxu0 %v1349
          %1390 = vmatprep.subr.bf16.mxu0 0
          %1391 = vmatpush1.bf16.msra.mxu0 %v1350
          %1392 = vmatprep.subr.bf16.mxu0 0
          %1393 = vmatpush1.bf16.msra.mxu0 %v1351
          %1394 = vmatprep.subr.bf16.mxu0 0
          %1395 = vmatpush1.bf16.msra.mxu0 %v1352
          %1396 = vmatprep.subr.bf16.mxu0 0
          %1397 = vmatpush1.bf16.msra.mxu0 %v1353
          %1398 = vmatprep.subr.bf16.mxu0 0
          %1399 = vmatpush1.bf16.msra.mxu0 %v1354
          %1400 = vmatprep.subr.bf16.mxu0 0
          %1401 = vmatpush1.bf16.msra.mxu0 %v1355
          %1402 = vmatprep.subr.bf16.mxu0 0
          %1403 = vmatpush1.bf16.msra.mxu0 %v1356
          %1404 = vmatprep.subr.bf16.mxu0 0
          %1405 = vmatpush1.bf16.msra.mxu0 %v1357
          %1406 = vmatprep.mubr.bf16.mxu0 %v272
          %1407 = vmatmul.mubr.bf16.gmra.mrb[0].mxu0 %v271
          %v1408 = vpop.f32.mrb[0].mxu0
          %v1409 = vadd.f32 0.0, %v1408
          %v1410 = vpop.f32.mrb[0].mxu0
          %v1411 = vpop.f32.mrb[0].mxu0
          %v1412 = vadd.f32 0.0, %v1411
          %v1413 = vpop.f32.mrb[0].mxu0
          %1414 = vmatprep.mubr.bf16.mxu0 %v276
          %1415 = vmatmul.mubr.bf16.gmra.mrb[0].mxu0 %v275
          %v1416 = vpop.f32.mrb[0].mxu0
          %v1417 = vadd.f32 0.0, %v1416
          %v1418 = vpop.f32.mrb[0].mxu0
          %v1419 = vpop.f32.mrb[0].mxu0
          %v1420 = vadd.f32 0.0, %v1419
          %v1421 = vpop.f32.mrb[0].mxu0
          %1422 = vmatprep.mubr.bf16.mxu0 %v280
          %1423 = vmatmul.mubr.bf16.gmra.mrb[0].mxu0 %v279
          %v1424 = vpop.f32.mrb[0].mxu0
          %v1425 = vadd.f32 0.0, %v1424
          %v1426 = vpop.f32.mrb[0].mxu0
          %v1427 = vpop.f32.mrb[0].mxu0
          %v1428 = vadd.f32 0.0, %v1427
          %v1429 = vpop.f32.mrb[0].mxu0
          %1430 = vmatprep.mubr.bf16.mxu0 %v284
          %1431 = vmatmul.mubr.bf16.gmra.mrb[0].mxu0 %v283
          %v1432 = vpop.f32.mrb[0].mxu0
          %v1433 = vadd.f32 0.0, %v1432
          %v1434 = vpop.f32.mrb[0].mxu0
          %v1435 = vpop.f32.mrb[0].mxu0
          %v1436 = vadd.f32 0.0, %v1435
          %v1437 = vpop.f32.mrb[0].mxu0
          %1438 = vmatprep.mubr.bf16.mxu0 %v288
          %1439 = vmatmul.mubr.bf16.gmra.mrb[0].mxu0 %v287
          %v1440 = vpop.f32.mrb[0].mxu0
          %v1441 = vadd.f32 0.0, %v1440
          %v1442 = vpop.f32.mrb[0].mxu0
          %v1443 = vpop.f32.mrb[0].mxu0
          %v1444 = vadd.f32 0.0, %v1443
          %v1445 = vpop.f32.mrb[0].mxu0
          %1446 = vmatprep.mubr.bf16.mxu0 %v292
          %1447 = vmatmul.mubr.bf16.gmra.mrb[0].mxu0 %v291
          %v1448 = vpop.f32.mrb[0].mxu0
          %v1449 = vadd.f32 0.0, %v1448
          %v1450 = vpop.f32.mrb[0].mxu0
          %v1451 = vpop.f32.mrb[0].mxu0
          %v1452 = vadd.f32 0.0, %v1451
          %v1453 = vpop.f32.mrb[0].mxu0
          %1454 = vmatprep.mubr.bf16.mxu0 %v296
          %1455 = vmatmul.mubr.bf16.gmra.mrb[0].mxu0 %v295
          %v1456 = vpop.f32.mrb[0].mxu0
          %v1457 = vadd.f32 0.0, %v1456
          %v1458 = vpop.f32.mrb[0].mxu0
          %v1459 = vpop.f32.mrb[0].mxu0
          %v1460 = vadd.f32 0.0, %v1459
          %v1461 = vpop.f32.mrb[0].mxu0
          %1462 = vmatprep.mubr.bf16.mxu0 %v300
          %1463 = vmatmul.mubr.bf16.gmra.mrb[0].mxu0 %v299
          %v1464 = vpop.f32.mrb[0].mxu0
          %v1465 = vadd.f32 0.0, %v1464
          %v1466 = vpop.f32.mrb[0].mxu0
          %v1467 = vpop.f32.mrb[0].mxu0
          %v1468 = vadd.f32 0.0, %v1467
          %v1469 = vpop.f32.mrb[0].mxu0
          %1470 = vmatprep.mubr.bf16.mxu0 %v304
          %1471 = vmatmul.mubr.bf16.gmra.mrb[0].mxu0 %v303
          %v1472 = vpop.f32.mrb[0].mxu0
          %v1473 = vadd.f32 0.0, %v1472
          %v1474 = vpop.f32.mrb[0].mxu0
          %v1475 = vpop.f32.mrb[0].mxu0
          %v1476 = vadd.f32 0.0, %v1475
          %v1477 = vpop.f32.mrb[0].mxu0
          %1478 = vmatprep.mubr.bf16.mxu0 %v308
          %1479 = vmatmul.mubr.bf16.gmra.mrb[0].mxu0 %v307
          %v1480 = vpop.f32.mrb[0].mxu0
          %v1481 = vadd.f32 0.0, %v1480
          %v1482 = vpop.f32.mrb[0].mxu0
          %v1483 = vpop.f32.mrb[0].mxu0
          %v1484 = vadd.f32 0.0, %v1483
          %v1485 = vpop.f32.mrb[0].mxu0
          %1486 = vmatprep.mubr.bf16.mxu0 %v312
          %1487 = vmatmul.mubr.bf16.gmra.mrb[0].mxu0 %v311
          %v1488 = vpop.f32.mrb[0].mxu0
          %v1489 = vadd.f32 0.0, %v1488
          %v1490 = vpop.f32.mrb[0].mxu0
          %v1491 = vpop.f32.mrb[0].mxu0
          %v1492 = vadd.f32 0.0, %v1491
          %v1493 = vpop.f32.mrb[0].mxu0
          %1494 = vmatprep.mubr.bf16.mxu0 %v316
          %1495 = vmatmul.mubr.bf16.gmra.mrb[0].mxu0 %v315
          %v1496 = vpop.f32.mrb[0].mxu0
          %v1497 = vadd.f32 0.0, %v1496
          %v1498 = vpop.f32.mrb[0].mxu0
          %v1499 = vpop.f32.mrb[0].mxu0
          %v1500 = vadd.f32 0.0, %v1499
          %v1501 = vpop.f32.mrb[0].mxu0
          %1502 = vmatprep.mubr.bf16.mxu0 %v320
          %1503 = vmatmul.mubr.bf16.gmra.mrb[0].mxu0 %v319
          %v1504 = vpop.f32.mrb[0].mxu0
          %v1505 = vadd.f32 0.0, %v1504
          %v1506 = vpop.f32.mrb[0].mxu0
          %v1507 = vpop.f32.mrb[0].mxu0
          %v1508 = vadd.f32 0.0, %v1507
          %v1509 = vpop.f32.mrb[0].mxu0
          %1510 = vmatprep.mubr.bf16.mxu0 %v324
          %1511 = vmatmul.mubr.bf16.gmra.mrb[0].mxu0 %v323
          %v1512 = vpop.f32.mrb[0].mxu0
          %v1513 = vadd.f32 0.0, %v1512
          %v1514 = vpop.f32.mrb[0].mxu0
          %v1515 = vpop.f32.mrb[0].mxu0
          %v1516 = vadd.f32 0.0, %v1515
          %v1517 = vpop.f32.mrb[0].mxu0
          %1518 = vmatprep.mubr.bf16.mxu0 %v328
          %1519 = vmatmul.mubr.bf16.gmra.mrb[0].mxu0 %v327
          %v1520 = vpop.f32.mrb[0].mxu0
          %v1521 = vadd.f32 0.0, %v1520
          %v1522 = vpop.f32.mrb[0].mxu0
          %v1523 = vpop.f32.mrb[0].mxu0
          %v1524 = vadd.f32 0.0, %v1523
          %v1525 = vpop.f32.mrb[0].mxu0
          %1526 = vmatprep.mubr.bf16.mxu0 %v332
          %1527 = vmatmul.mubr.bf16.gmra.mrb[0].mxu0 %v331
          %v1528 = vpop.f32.mrb[0].mxu0
          %v1529 = vadd.f32 0.0, %v1528
          %v1530 = vpop.f32.mrb[0].mxu0
          %v1531 = vpop.f32.mrb[0].mxu0
          %v1532 = vadd.f32 0.0, %v1531
          %v1533 = vpop.f32.mrb[0].mxu0
          %1534 = vdwg.mxu0
          %1535 = vmatprep.subr.bf16.mxu0 0
          %1536 = vmatpush1.bf16.msra.mxu0 %v1358
          %1537 = vmatprep.subr.bf16.mxu0 0
          %1538 = vmatpush1.bf16.msra.mxu0 %v1359
          %1539 = vmatprep.subr.bf16.mxu0 0
          %1540 = vmatpush1.bf16.msra.mxu0 %v1360
          %1541 = vmatprep.subr.bf16.mxu0 0
          %1542 = vmatpush1.bf16.msra.mxu0 %v1361
          %1543 = vmatprep.subr.bf16.mxu0 0
          %1544 = vmatpush1.bf16.msra.mxu0 %v1362
          %1545 = vmatprep.subr.bf16.mxu0 0
          %1546 = vmatpush1.bf16.msra.mxu0 %v1363
          %1547 = vmatprep.subr.bf16.mxu0 0
          %1548 = vmatpush1.bf16.msra.mxu0 %v1364
          %1549 = vmatprep.subr.bf16.mxu0 0
          %1550 = vmatpush1.bf16.msra.mxu0 %v1365
          %1551 = vmatprep.subr.bf16.mxu0 0
          %1552 = vmatpush1.bf16.msra.mxu0 %v1366
          %1553 = vmatprep.subr.bf16.mxu0 0
          %1554 = vmatpush1.bf16.msra.mxu0 %v1367
          %1555 = vmatprep.subr.bf16.mxu0 0
          %1556 = vmatpush1.bf16.msra.mxu0 %v1368
          %1557 = vmatprep.subr.bf16.mxu0 0
          %1558 = vmatpush1.bf16.msra.mxu0 %v1369
          %1559 = vmatprep.subr.bf16.mxu0 0
          %1560 = vmatpush1.bf16.msra.mxu0 %v1370
          %1561 = vmatprep.subr.bf16.mxu0 0
          %1562 = vmatpush1.bf16.msra.mxu0 %v1371
          %1563 = vmatprep.subr.bf16.mxu0 0
          %1564 = vmatpush1.bf16.msra.mxu0 %v1372
          %1565 = vmatprep.subr.bf16.mxu0 0
          %1566 = vmatpush1.bf16.msra.mxu0 %v1373
          %1567 = vmatprep.mubr.bf16.mxu0 %v274
          %1568 = vmatmul.mubr.bf16.gmra.mrb[0].mxu0 %v273
          %v1569 = vpop.f32.mrb[0].mxu0
          %v1570 = vadd.f32 %v1409, %v1569
          %v1571 = vpop.f32.mrb[0].mxu0
          %v1572 = vpop.f32.mrb[0].mxu0
          %v1573 = vadd.f32 %v1412, %v1572
          %v1574 = vpop.f32.mrb[0].mxu0
          %1575 = vmatprep.mubr.bf16.mxu0 %v278
          %1576 = vmatmul.mubr.bf16.gmra.mrb[0].mxu0 %v277
          %v1577 = vpop.f32.mrb[0].mxu0
          %v1578 = vadd.f32 %v1417, %v1577
          %v1579 = vpop.f32.mrb[0].mxu0
          %v1580 = vpop.f32.mrb[0].mxu0
          %v1581 = vadd.f32 %v1420, %v1580
          %v1582 = vpop.f32.mrb[0].mxu0
          %1583 = vmatprep.mubr.bf16.mxu0 %v282
          %1584 = vmatmul.mubr.bf16.gmra.mrb[0].mxu0 %v281
          %v1585 = vpop.f32.mrb[0].mxu0
          %v1586 = vadd.f32 %v1425, %v1585
          %v1587 = vpop.f32.mrb[0].mxu0
          %v1588 = vpop.f32.mrb[0].mxu0
          %v1589 = vadd.f32 %v1428, %v1588
          %v1590 = vpop.f32.mrb[0].mxu0
          %1591 = vmatprep.mubr.bf16.mxu0 %v286
          %1592 = vmatmul.mubr.bf16.gmra.mrb[0].mxu0 %v285
          %v1593 = vpop.f32.mrb[0].mxu0
          %v1594 = vadd.f32 %v1433, %v1593
          %v1595 = vpop.f32.mrb[0].mxu0
          %v1596 = vpop.f32.mrb[0].mxu0
          %v1597 = vadd.f32 %v1436, %v1596
          %v1598 = vpop.f32.mrb[0].mxu0
          %1599 = vmatprep.mubr.bf16.mxu0 %v290
          %1600 = vmatmul.mubr.bf16.gmra.mrb[0].mxu0 %v289
          %v1601 = vpop.f32.mrb[0].mxu0
          %v1602 = vadd.f32 %v1441, %v1601
          %v1603 = vpop.f32.mrb[0].mxu0
          %v1604 = vpop.f32.mrb[0].mxu0
          %v1605 = vadd.f32 %v1444, %v1604
          %v1606 = vpop.f32.mrb[0].mxu0
          %1607 = vmatprep.mubr.bf16.mxu0 %v294
          %1608 = vmatmul.mubr.bf16.gmra.mrb[0].mxu0 %v293
          %v1609 = vpop.f32.mrb[0].mxu0
          %v1610 = vadd.f32 %v1449, %v1609
          %v1611 = vpop.f32.mrb[0].mxu0
          %v1612 = vpop.f32.mrb[0].mxu0
          %v1613 = vadd.f32 %v1452, %v1612
          %v1614 = vpop.f32.mrb[0].mxu0
          %1615 = vmatprep.mubr.bf16.mxu0 %v298
          %1616 = vmatmul.mubr.bf16.gmra.mrb[0].mxu0 %v297
          %v1617 = vpop.f32.mrb[0].mxu0
          %v1618 = vadd.f32 %v1457, %v1617
          %v1619 = vpop.f32.mrb[0].mxu0
          %v1620 = vpop.f32.mrb[0].mxu0
          %v1621 = vadd.f32 %v1460, %v1620
          %v1622 = vpop.f32.mrb[0].mxu0
          %1623 = vmatprep.mubr.bf16.mxu0 %v302
          %1624 = vmatmul.mubr.bf16.gmra.mrb[0].mxu0 %v301
          %v1625 = vpop.f32.mrb[0].mxu0
          %v1626 = vadd.f32 %v1465, %v1625
          %v1627 = vpop.f32.mrb[0].mxu0
          %v1628 = vpop.f32.mrb[0].mxu0
          %v1629 = vadd.f32 %v1468, %v1628
          %v1630 = vpop.f32.mrb[0].mxu0
          %1631 = vmatprep.mubr.bf16.mxu0 %v306
          %1632 = vmatmul.mubr.bf16.gmra.mrb[0].mxu0 %v305
          %v1633 = vpop.f32.mrb[0].mxu0
          %v1634 = vadd.f32 %v1473, %v1633
          %v1635 = vpop.f32.mrb[0].mxu0
          %v1636 = vpop.f32.mrb[0].mxu0
          %v1637 = vadd.f32 %v1476, %v1636
          %v1638 = vpop.f32.mrb[0].mxu0
          %1639 = vmatprep.mubr.bf16.mxu0 %v310
          %1640 = vmatmul.mubr.bf16.gmra.mrb[0].mxu0 %v309
          %v1641 = vpop.f32.mrb[0].mxu0
          %v1642 = vadd.f32 %v1481, %v1641
          %v1643 = vpop.f32.mrb[0].mxu0
          %v1644 = vpop.f32.mrb[0].mxu0
          %v1645 = vadd.f32 %v1484, %v1644
          %v1646 = vpop.f32.mrb[0].mxu0
          %1647 = vmatprep.mubr.bf16.mxu0 %v314
          %1648 = vmatmul.mubr.bf16.gmra.mrb[0].mxu0 %v313
          %v1649 = vpop.f32.mrb[0].mxu0
          %v1650 = vadd.f32 %v1489, %v1649
          %v1651 = vpop.f32.mrb[0].mxu0
          %v1652 = vpop.f32.mrb[0].mxu0
          %v1653 = vadd.f32 %v1492, %v1652
          %v1654 = vpop.f32.mrb[0].mxu0
          %1655 = vmatprep.mubr.bf16.mxu0 %v318
          %1656 = vmatmul.mubr.bf16.gmra.mrb[0].mxu0 %v317
          %v1657 = vpop.f32.mrb[0].mxu0
          %v1658 = vadd.f32 %v1497, %v1657
          %v1659 = vpop.f32.mrb[0].mxu0
          %v1660 = vpop.f32.mrb[0].mxu0
          %v1661 = vadd.f32 %v1500, %v1660
          %v1662 = vpop.f32.mrb[0].mxu0
          %1663 = vmatprep.mubr.bf16.mxu0 %v322
          %1664 = vmatmul.mubr.bf16.gmra.mrb[0].mxu0 %v321
          %v1665 = vpop.f32.mrb[0].mxu0
          %v1666 = vadd.f32 %v1505, %v1665
          %v1667 = vpop.f32.mrb[0].mxu0
          %v1668 = vpop.f32.mrb[0].mxu0
          %v1669 = vadd.f32 %v1508, %v1668
          %v1670 = vpop.f32.mrb[0].mxu0
          %1671 = vmatprep.mubr.bf16.mxu0 %v326
          %1672 = vmatmul.mubr.bf16.gmra.mrb[0].mxu0 %v325
          %v1673 = vpop.f32.mrb[0].mxu0
          %v1674 = vadd.f32 %v1513, %v1673
          %v1675 = vpop.f32.mrb[0].mxu0
          %v1676 = vpop.f32.mrb[0].mxu0
          %v1677 = vadd.f32 %v1516, %v1676
          %v1678 = vpop.f32.mrb[0].mxu0
          %1679 = vmatprep.mubr.bf16.mxu0 %v330
          %1680 = vmatmul.mubr.bf16.gmra.mrb[0].mxu0 %v329
          %v1681 = vpop.f32.mrb[0].mxu0
          %v1682 = vadd.f32 %v1521, %v1681
          %v1683 = vpop.f32.mrb[0].mxu0
          %v1684 = vpop.f32.mrb[0].mxu0
          %v1685 = vadd.f32 %v1524, %v1684
          %v1686 = vpop.f32.mrb[0].mxu0
          %1687 = vmatprep.mubr.bf16.mxu0 %v334
          %1688 = vmatmul.mubr.bf16.gmra.mrb[0].mxu0 %v333
          %v1689 = vpop.f32.mrb[0].mxu0
          %v1690 = vadd.f32 %v1529, %v1689
          %v1691 = vpop.f32.mrb[0].mxu0
          %v1692 = vpop.f32.mrb[0].mxu0
          %v1693 = vadd.f32 %v1532, %v1692
          %v1694 = vpop.f32.mrb[0].mxu0
          %1695 = vdwg.mxu0
          %1696 = vst [vmem:[#allocation5] sm:$0xff] %v1570
          %1697 = vst [vmem:[#allocation5 + $0x8] sm:$0xff] %v1573
          %1698 = vst [vmem:[#allocation5 + $0x10] sm:$0xff] %v1578
          %1699 = vst [vmem:[#allocation5 + $0x18] sm:$0xff] %v1581
          %1700 = vst [vmem:[#allocation5 + $0x20] sm:$0xff] %v1586
          %1701 = vst [vmem:[#allocation5 + $0x28] sm:$0xff] %v1589
          %1702 = vst [vmem:[#allocation5 + $0x30] sm:$0xff] %v1594
          %1703 = vst [vmem:[#allocation5 + $0x38] sm:$0xff] %v1597
          %1704 = vst [vmem:[#allocation5 + $0x40] sm:$0xff] %v1602
          %1705 = vst [vmem:[#allocation5 + $0x48] sm:$0xff] %v1605
          %1706 = vst [vmem:[#allocation5 + $0x50] sm:$0xff] %v1610
          %1707 = vst [vmem:[#allocation5 + $0x58] sm:$0xff] %v1613
          %1708 = vst [vmem:[#allocation5 + $0x60] sm:$0xff] %v1618
          %1709 = vst [vmem:[#allocation5 + $0x68] sm:$0xff] %v1621
          %1710 = vst [vmem:[#allocation5 + $0x70] sm:$0xff] %v1626
          %1711 = vst [vmem:[#allocation5 + $0x78] sm:$0xff] %v1629
          %1712 = vst [vmem:[#allocation5 + $0x80] sm:$0xff] %v1634
          %1713 = vst [vmem:[#allocation5 + $0x88] sm:$0xff] %v1637
          %1714 = vst [vmem:[#allocation5 + $0x90] sm:$0xff] %v1642
          %1715 = vst [vmem:[#allocation5 + $0x98] sm:$0xff] %v1645
          %1716 = vst [vmem:[#allocation5 + $0xa0] sm:$0xff] %v1650
          %1717 = vst [vmem:[#allocation5 + $0xa8] sm:$0xff] %v1653
          %1718 = vst [vmem:[#allocation5 + $0xb0] sm:$0xff] %v1658
          %1719 = vst [vmem:[#allocation5 + $0xb8] sm:$0xff] %v1661
          %1720 = vst [vmem:[#allocation5 + $0xc0] sm:$0xff] %v1666
          %1721 = vst [vmem:[#allocation5 + $0xc8] sm:$0xff] %v1669
          %1722 = vst [vmem:[#allocation5 + $0xd0] sm:$0xff] %v1674
          %1723 = vst [vmem:[#allocation5 + $0xd8] sm:$0xff] %v1677
          %1724 = vst [vmem:[#allocation5 + $0xe0] sm:$0xff] %v1682
          %1725 = vst [vmem:[#allocation5 + $0xe8] sm:$0xff] %v1685
          %1726 = vst [vmem:[#allocation5 + $0xf0] sm:$0xff] %v1690
          %1727 = vst [vmem:[#allocation5 + $0xf8] sm:$0xff] %v1693
        $region56: #{_gcn3_forward_fused.1} parent=31 // pred_fallthru
          _
        %v1728 = vld [vmem:[#allocation5] sm:$0xff]
        %v1729 = vld [vmem:[#allocation5 + $0x8] sm:$0xff]
        %v1730 = vld [vmem:[#allocation5 + $0x10] sm:$0xff]
        %v1731 = vld [vmem:[#allocation5 + $0x18] sm:$0xff]
        %v1732 = vld [vmem:[#allocation5 + $0x20] sm:$0xff]
        %v1733 = vld [vmem:[#allocation5 + $0x28] sm:$0xff]
        %v1734 = vld [vmem:[#allocation5 + $0x30] sm:$0xff]
        %v1735 = vld [vmem:[#allocation5 + $0x38] sm:$0xff]
        %v1736 = vld [vmem:[#allocation5 + $0x40] sm:$0xff]
        %v1737 = vld [vmem:[#allocation5 + $0x48] sm:$0xff]
        %v1738 = vld [vmem:[#allocation5 + $0x50] sm:$0xff]
        %v1739 = vld [vmem:[#allocation5 + $0x58] sm:$0xff]
        %v1740 = vld [vmem:[#allocation5 + $0x60] sm:$0xff]
        %v1741 = vld [vmem:[#allocation5 + $0x68] sm:$0xff]
        %v1742 = vld [vmem:[#allocation5 + $0x70] sm:$0xff]
        %v1743 = vld [vmem:[#allocation5 + $0x78] sm:$0xff]
        %v1744 = vld [vmem:[#allocation5 + $0x80] sm:$0xff]
        %v1745 = vld [vmem:[#allocation5 + $0x88] sm:$0xff]
        %v1746 = vld [vmem:[#allocation5 + $0x90] sm:$0xff]
        %v1747 = vld [vmem:[#allocation5 + $0x98] sm:$0xff]
        %v1748 = vld [vmem:[#allocation5 + $0xa0] sm:$0xff]
        %v1749 = vld [vmem:[#allocation5 + $0xa8] sm:$0xff]
        %v1750 = vld [vmem:[#allocation5 + $0xb0] sm:$0xff]
        %v1751 = vld [vmem:[#allocation5 + $0xb8] sm:$0xff]
        %v1752 = vld [vmem:[#allocation5 + $0xc0] sm:$0xff]
        %v1753 = vld [vmem:[#allocation5 + $0xc8] sm:$0xff]
        %v1754 = vld [vmem:[#allocation5 + $0xd0] sm:$0xff]
        %v1755 = vld [vmem:[#allocation5 + $0xd8] sm:$0xff]
        %v1756 = vld [vmem:[#allocation5 + $0xe0] sm:$0xff]
        %v1757 = vld [vmem:[#allocation5 + $0xe8] sm:$0xff]
        %v1758 = vld [vmem:[#allocation5 + $0xf0] sm:$0xff]
        %v1759 = vld [vmem:[#allocation5 + $0xf8] sm:$0xff]
        %v1760 = vpack.c.bf16 %v1729, %v1728
        %v1761 = vpack.c.bf16 %v1731, %v1730
        %v1762 = vpack.c.bf16 %v1733, %v1732
        %v1763 = vpack.c.bf16 %v1735, %v1734
        %v1764 = vpack.c.bf16 %v1737, %v1736
        %v1765 = vpack.c.bf16 %v1739, %v1738
        %v1766 = vpack.c.bf16 %v1741, %v1740
        %v1767 = vpack.c.bf16 %v1743, %v1742
        %v1768 = vpack.c.bf16 %v1745, %v1744
        %v1769 = vpack.c.bf16 %v1747, %v1746
        %v1770 = vpack.c.bf16 %v1749, %v1748
        %v1771 = vpack.c.bf16 %v1751, %v1750
        %v1772 = vpack.c.bf16 %v1753, %v1752
        %v1773 = vpack.c.bf16 %v1755, %v1754
        %v1774 = vpack.c.bf16 %v1757, %v1756
        %v1775 = vpack.c.bf16 %v1759, %v1758
        %v1776 = vld [vmem:[%s195] sm:$0xf]
        %v1777 = vld [vmem:[%s195 + $0x4] sm:$0xf]
        %v1778 = vld [vmem:[%s195 + $0x8] sm:$0xf]
        %v1779 = vld [vmem:[%s195 + $0xc] sm:$0xf]
        %v1780 = vld [vmem:[%s195 + $0x10] sm:$0xf]
        %v1781 = vld [vmem:[%s195 + $0x14] sm:$0xf]
        %v1782 = vld [vmem:[%s195 + $0x18] sm:$0xf]
        %v1783 = vld [vmem:[%s195 + $0x1c] sm:$0xf]
        %v1784 = vld [vmem:[%s195 + $0x20] sm:$0xf]
        %v1785 = vld [vmem:[%s195 + $0x24] sm:$0xf]
        %v1786 = vld [vmem:[%s195 + $0x28] sm:$0xf]
        %v1787 = vld [vmem:[%s195 + $0x2c] sm:$0xf]
        %v1788 = vld [vmem:[%s195 + $0x30] sm:$0xf]
        %v1789 = vld [vmem:[%s195 + $0x34] sm:$0xf]
        %v1790 = vld [vmem:[%s195 + $0x38] sm:$0xf]
        %v1791 = vld [vmem:[%s195 + $0x3c] sm:$0xf]
        %v1792 = vld [vmem:[%s218] sm:$0x1]
        %v1794 = vlaneseq
        %v1795 = vshrl.u32 %v1794, 7
        %v1796 = vsub.s32 0, %v1795
        %v1797 = vrot.slane %v1792, %v1796
        %v1815 = vunpack.c.l.b16 %v1776
        %v1816 = vunpack.c.l.b16 %v1777
        %v1817 = vunpack.c.l.b16 %v1778
        %v1818 = vunpack.c.l.b16 %v1779
        %v1819 = vunpack.c.l.b16 %v1780
        %v1820 = vunpack.c.l.b16 %v1781
        %v1821 = vunpack.c.l.b16 %v1782
        %v1822 = vunpack.c.l.b16 %v1783
        %v1823 = vunpack.c.l.b16 %v1784
        %v1824 = vunpack.c.l.b16 %v1785
        %v1825 = vunpack.c.l.b16 %v1786
        %v1826 = vunpack.c.l.b16 %v1787
        %v1827 = vunpack.c.l.b16 %v1788
        %v1828 = vunpack.c.l.b16 %v1789
        %v1829 = vunpack.c.l.b16 %v1790
        %v1830 = vunpack.c.l.b16 %v1791
        %v1831 = vpack.c.b16 %v1816, %v1815
        %v1832 = vpack.c.b16 %v1818, %v1817
        %v1833 = vpack.c.b16 %v1820, %v1819
        %v1834 = vpack.c.b16 %v1822, %v1821
        %v1835 = vpack.c.b16 %v1824, %v1823
        %v1836 = vpack.c.b16 %v1826, %v1825
        %v1837 = vpack.c.b16 %v1828, %v1827
        %v1838 = vpack.c.b16 %v1830, %v1829
        %1847 = vmatprep.subr.bf16.mxu0 0
        %1848 = vmatpush1.bf16.msra.mxu0 %v1831
        %1849 = vmatprep.subr.bf16.mxu0 0
        %1850 = vmatpush1.bf16.msra.mxu0 %v1832
        %1851 = vmatprep.subr.bf16.mxu0 0
        %1852 = vmatpush1.bf16.msra.mxu0 %v1833
        %1853 = vmatprep.subr.bf16.mxu0 0
        %1854 = vmatpush1.bf16.msra.mxu0 %v1834
        %1855 = vmatprep.subr.bf16.mxu0 0
        %1856 = vmatpush1.bf16.msra.mxu0 %v1835
        %1857 = vmatprep.subr.bf16.mxu0 0
        %1858 = vmatpush1.bf16.msra.mxu0 %v1836
        %1859 = vmatprep.subr.bf16.mxu0 0
        %1860 = vmatpush1.bf16.msra.mxu0 %v1837
        %1861 = vmatprep.subr.bf16.mxu0 0
        %1862 = vmatpush1.bf16.msra.mxu0 %v1838
        %1863 = vmatprep.subr.bf16.mxu0 0
        %1864 = vmatpush1.bf16.msra.mxu0 0
        %1865 = vmatprep.subr.bf16.mxu0 0
        %1866 = vmatpush1.bf16.msra.mxu0 0
        %1867 = vmatprep.subr.bf16.mxu0 0
        %1868 = vmatpush1.bf16.msra.mxu0 0
        %1869 = vmatprep.subr.bf16.mxu0 0
        %1870 = vmatpush1.bf16.msra.mxu0 0
        %1871 = vmatprep.subr.bf16.mxu0 0
        %1872 = vmatpush1.bf16.msra.mxu0 0
        %1873 = vmatprep.subr.bf16.mxu0 0
        %1874 = vmatpush1.bf16.msra.mxu0 0
        %1875 = vmatprep.subr.bf16.mxu0 0
        %1876 = vmatpush1.bf16.msra.mxu0 0
        %1877 = vmatprep.subr.bf16.mxu0 0
        %1878 = vmatpush1.bf16.msra.mxu0 0
        %1879 = vmatprep.mubr.bf16.mxu0 0
        %1880 = vmatmul.mubr.bf16.gmra.mrb[0].mxu0 %v1760
        %v1881 = vpop.f32.mrb[0].mxu0
        %v1882 = vadd.f32 %v1797, %v1881
        %v1883 = vpop.f32.mrb[0].mxu0
        %v1884 = vpop.f32.mrb[0].mxu0
        %v1885 = vadd.f32 %v1797, %v1884
        %v1886 = vpop.f32.mrb[0].mxu0
        %1887 = vmatprep.mubr.bf16.mxu0 0
        %1888 = vmatmul.mubr.bf16.gmra.mrb[0].mxu0 %v1761
        %v1889 = vpop.f32.mrb[0].mxu0
        %v1890 = vadd.f32 %v1797, %v1889
        %v1891 = vpop.f32.mrb[0].mxu0
        %v1892 = vpop.f32.mrb[0].mxu0
        %v1893 = vadd.f32 %v1797, %v1892
        %v1894 = vpop.f32.mrb[0].mxu0
        %1895 = vmatprep.mubr.bf16.mxu0 0
        %1896 = vmatmul.mubr.bf16.gmra.mrb[0].mxu0 %v1762
        %v1897 = vpop.f32.mrb[0].mxu0
        %v1898 = vadd.f32 %v1797, %v1897
        %v1899 = vpop.f32.mrb[0].mxu0
        %v1900 = vpop.f32.mrb[0].mxu0
        %v1901 = vadd.f32 %v1797, %v1900
        %v1902 = vpop.f32.mrb[0].mxu0
        %1903 = vmatprep.mubr.bf16.mxu0 0
        %1904 = vmatmul.mubr.bf16.gmra.mrb[0].mxu0 %v1763
        %v1905 = vpop.f32.mrb[0].mxu0
        %v1906 = vadd.f32 %v1797, %v1905
        %v1907 = vpop.f32.mrb[0].mxu0
        %v1908 = vpop.f32.mrb[0].mxu0
        %v1909 = vadd.f32 %v1797, %v1908
        %v1910 = vpop.f32.mrb[0].mxu0
        %1911 = vmatprep.mubr.bf16.mxu0 0
        %1912 = vmatmul.mubr.bf16.gmra.mrb[0].mxu0 %v1764
        %v1913 = vpop.f32.mrb[0].mxu0
        %v1914 = vadd.f32 %v1797, %v1913
        %v1915 = vpop.f32.mrb[0].mxu0
        %v1916 = vpop.f32.mrb[0].mxu0
        %v1917 = vadd.f32 %v1797, %v1916
        %v1918 = vpop.f32.mrb[0].mxu0
        %1919 = vmatprep.mubr.bf16.mxu0 0
        %1920 = vmatmul.mubr.bf16.gmra.mrb[0].mxu0 %v1765
        %v1921 = vpop.f32.mrb[0].mxu0
        %v1922 = vadd.f32 %v1797, %v1921
        %v1923 = vpop.f32.mrb[0].mxu0
        %v1924 = vpop.f32.mrb[0].mxu0
        %v1925 = vadd.f32 %v1797, %v1924
        %v1926 = vpop.f32.mrb[0].mxu0
        %1927 = vmatprep.mubr.bf16.mxu0 0
        %1928 = vmatmul.mubr.bf16.gmra.mrb[0].mxu0 %v1766
        %v1929 = vpop.f32.mrb[0].mxu0
        %v1930 = vadd.f32 %v1797, %v1929
        %v1931 = vpop.f32.mrb[0].mxu0
        %v1932 = vpop.f32.mrb[0].mxu0
        %v1933 = vadd.f32 %v1797, %v1932
        %v1934 = vpop.f32.mrb[0].mxu0
        %1935 = vmatprep.mubr.bf16.mxu0 0
        %1936 = vmatmul.mubr.bf16.gmra.mrb[0].mxu0 %v1767
        %v1937 = vpop.f32.mrb[0].mxu0
        %v1938 = vadd.f32 %v1797, %v1937
        %v1939 = vpop.f32.mrb[0].mxu0
        %v1940 = vpop.f32.mrb[0].mxu0
        %v1941 = vadd.f32 %v1797, %v1940
        %v1942 = vpop.f32.mrb[0].mxu0
        %1943 = vmatprep.mubr.bf16.mxu0 0
        %1944 = vmatmul.mubr.bf16.gmra.mrb[0].mxu0 %v1768
        %v1945 = vpop.f32.mrb[0].mxu0
        %v1946 = vadd.f32 %v1797, %v1945
        %v1947 = vpop.f32.mrb[0].mxu0
        %v1948 = vpop.f32.mrb[0].mxu0
        %v1949 = vadd.f32 %v1797, %v1948
        %v1950 = vpop.f32.mrb[0].mxu0
        %1951 = vmatprep.mubr.bf16.mxu0 0
        %1952 = vmatmul.mubr.bf16.gmra.mrb[0].mxu0 %v1769
        %v1953 = vpop.f32.mrb[0].mxu0
        %v1954 = vadd.f32 %v1797, %v1953
        %v1955 = vpop.f32.mrb[0].mxu0
        %v1956 = vpop.f32.mrb[0].mxu0
        %v1957 = vadd.f32 %v1797, %v1956
        %v1958 = vpop.f32.mrb[0].mxu0
        %1959 = vmatprep.mubr.bf16.mxu0 0
        %1960 = vmatmul.mubr.bf16.gmra.mrb[0].mxu0 %v1770
        %v1961 = vpop.f32.mrb[0].mxu0
        %v1962 = vadd.f32 %v1797, %v1961
        %v1963 = vpop.f32.mrb[0].mxu0
        %v1964 = vpop.f32.mrb[0].mxu0
        %v1965 = vadd.f32 %v1797, %v1964
        %v1966 = vpop.f32.mrb[0].mxu0
        %1967 = vmatprep.mubr.bf16.mxu0 0
        %1968 = vmatmul.mubr.bf16.gmra.mrb[0].mxu0 %v1771
        %v1969 = vpop.f32.mrb[0].mxu0
        %v1970 = vadd.f32 %v1797, %v1969
        %v1971 = vpop.f32.mrb[0].mxu0
        %v1972 = vpop.f32.mrb[0].mxu0
        %v1973 = vadd.f32 %v1797, %v1972
        %v1974 = vpop.f32.mrb[0].mxu0
        %1975 = vmatprep.mubr.bf16.mxu0 0
        %1976 = vmatmul.mubr.bf16.gmra.mrb[0].mxu0 %v1772
        %v1977 = vpop.f32.mrb[0].mxu0
        %v1978 = vadd.f32 %v1797, %v1977
        %v1979 = vpop.f32.mrb[0].mxu0
        %v1980 = vpop.f32.mrb[0].mxu0
        %v1981 = vadd.f32 %v1797, %v1980
        %v1982 = vpop.f32.mrb[0].mxu0
        %1983 = vmatprep.mubr.bf16.mxu0 0
        %1984 = vmatmul.mubr.bf16.gmra.mrb[0].mxu0 %v1773
        %v1985 = vpop.f32.mrb[0].mxu0
        %v1986 = vadd.f32 %v1797, %v1985
        %v1987 = vpop.f32.mrb[0].mxu0
        %v1988 = vpop.f32.mrb[0].mxu0
        %v1989 = vadd.f32 %v1797, %v1988
        %v1990 = vpop.f32.mrb[0].mxu0
        %1991 = vmatprep.mubr.bf16.mxu0 0
        %1992 = vmatmul.mubr.bf16.gmra.mrb[0].mxu0 %v1774
        %v1993 = vpop.f32.mrb[0].mxu0
        %v1994 = vadd.f32 %v1797, %v1993
        %v1995 = vpop.f32.mrb[0].mxu0
        %v1996 = vpop.f32.mrb[0].mxu0
        %v1997 = vadd.f32 %v1797, %v1996
        %v1998 = vpop.f32.mrb[0].mxu0
        %1999 = vmatprep.mubr.bf16.mxu0 0
        %2000 = vmatmul.mubr.bf16.gmra.mrb[0].mxu0 %v1775
        %v2001 = vpop.f32.mrb[0].mxu0
        %v2002 = vadd.f32 %v1797, %v2001
        %v2003 = vpop.f32.mrb[0].mxu0
        %v2004 = vpop.f32.mrb[0].mxu0
        %v2005 = vadd.f32 %v1797, %v2004
        %v2006 = vpop.f32.mrb[0].mxu0
        %2007 = vdwg.mxu0
        // Predicated region
        $region57: #{_gcn3_forward_fused.1} parent=31 // pred_check
          %p2008 = pneg %p220
        $region58: #{_gcn3_forward_fused.1} parent=31 // pred_check_branch
          %2010 = sbr.rel (%p2008) target = $region60
        $region59: #{_gcn3_forward_fused.1} parent=31 // pred_region
          %v2011 = vmax.f32 %v1882, 0.0
          %v2012 = vmax.f32 %v1885, 0.0
          %v2013 = vmax.f32 %v1890, 0.0
          %v2014 = vmax.f32 %v1893, 0.0
          %v2015 = vmax.f32 %v1898, 0.0
          %v2016 = vmax.f32 %v1901, 0.0
          %v2017 = vmax.f32 %v1906, 0.0
          %v2018 = vmax.f32 %v1909, 0.0
          %v2019 = vmax.f32 %v1914, 0.0
          %v2020 = vmax.f32 %v1917, 0.0
          %v2021 = vmax.f32 %v1922, 0.0
          %v2022 = vmax.f32 %v1925, 0.0
          %v2023 = vmax.f32 %v1930, 0.0
          %v2024 = vmax.f32 %v1933, 0.0
          %v2025 = vmax.f32 %v1938, 0.0
          %v2026 = vmax.f32 %v1941, 0.0
          %v2027 = vmax.f32 %v1946, 0.0
          %v2028 = vmax.f32 %v1949, 0.0
          %v2029 = vmax.f32 %v1954, 0.0
          %v2030 = vmax.f32 %v1957, 0.0
          %v2031 = vmax.f32 %v1962, 0.0
          %v2032 = vmax.f32 %v1965, 0.0
          %v2033 = vmax.f32 %v1970, 0.0
          %v2034 = vmax.f32 %v1973, 0.0
          %v2035 = vmax.f32 %v1978, 0.0
          %v2036 = vmax.f32 %v1981, 0.0
          %v2037 = vmax.f32 %v1986, 0.0
          %v2038 = vmax.f32 %v1989, 0.0
          %v2039 = vmax.f32 %v1994, 0.0
          %v2040 = vmax.f32 %v1997, 0.0
          %v2041 = vmax.f32 %v2002, 0.0
          %v2042 = vmax.f32 %v2005, 0.0
          %v2043 = vpack.c.bf16 %v2012, %v2011
          %v2044 = vpack.c.bf16 %v2014, %v2013
          %v2045 = vpack.c.bf16 %v2016, %v2015
          %v2046 = vpack.c.bf16 %v2018, %v2017
          %v2047 = vpack.c.bf16 %v2020, %v2019
          %v2048 = vpack.c.bf16 %v2022, %v2021
          %v2049 = vpack.c.bf16 %v2024, %v2023
          %v2050 = vpack.c.bf16 %v2026, %v2025
          %v2051 = vpack.c.bf16 %v2028, %v2027
          %v2052 = vpack.c.bf16 %v2030, %v2029
          %v2053 = vpack.c.bf16 %v2032, %v2031
          %v2054 = vpack.c.bf16 %v2034, %v2033
          %v2055 = vpack.c.bf16 %v2036, %v2035
          %v2056 = vpack.c.bf16 %v2038, %v2037
          %v2057 = vpack.c.bf16 %v2040, %v2039
          %v2058 = vpack.c.bf16 %v2042, %v2041
          %s2059 = smul.addr %s266, 8
          %s2060 = scalar_lea.vmem [#allocation3], %s2059
          %2061 = vst [vmem:[%s2060] sm:$0xff] %v2043
          %2062 = vst [vmem:[%s2060 + $0x8] sm:$0xff] %v2044
          %2063 = vst [vmem:[%s2060 + $0x10] sm:$0xff] %v2045
          %2064 = vst [vmem:[%s2060 + $0x18] sm:$0xff] %v2046
          %2065 = vst [vmem:[%s2060 + $0x20] sm:$0xff] %v2047
          %2066 = vst [vmem:[%s2060 + $0x28] sm:$0xff] %v2048
          %2067 = vst [vmem:[%s2060 + $0x30] sm:$0xff] %v2049
          %2068 = vst [vmem:[%s2060 + $0x38] sm:$0xff] %v2050
          %2069 = vst [vmem:[%s2060 + $0x40] sm:$0xff] %v2051
          %2070 = vst [vmem:[%s2060 + $0x48] sm:$0xff] %v2052
          %2071 = vst [vmem:[%s2060 + $0x50] sm:$0xff] %v2053
          %2072 = vst [vmem:[%s2060 + $0x58] sm:$0xff] %v2054
          %2073 = vst [vmem:[%s2060 + $0x60] sm:$0xff] %v2055
          %2074 = vst [vmem:[%s2060 + $0x68] sm:$0xff] %v2056
          %2075 = vst [vmem:[%s2060 + $0x70] sm:$0xff] %v2057
          %2076 = vst [vmem:[%s2060 + $0x78] sm:$0xff] %v2058
        $region60: #{_gcn3_forward_fused.1} parent=31 // pred_fallthru
          _
        // Predicated region
        $region61: #{_gcn3_forward_fused.1} parent=31 // pred_check
          %p2077 = pneg %p948
        $region62: #{_gcn3_forward_fused.1} parent=31 // pred_check_branch
          %2079 = sbr.rel (%p2077) target = $region64
        $region63: #{_gcn3_forward_fused.1} parent=31 // pred_region
          %v2080 = vmax.f32 %v1882, 0.0
          %v2081 = vmax.f32 %v1885, 0.0
          %v2082 = vmax.f32 %v1890, 0.0
          %v2083 = vmax.f32 %v1893, 0.0
          %v2084 = vmax.f32 %v1898, 0.0
          %v2085 = vmax.f32 %v1901, 0.0
          %v2086 = vmax.f32 %v1906, 0.0
          %v2087 = vmax.f32 %v1909, 0.0
          %v2088 = vmax.f32 %v1914, 0.0
          %v2089 = vmax.f32 %v1917, 0.0
          %v2090 = vmax.f32 %v1922, 0.0
          %v2091 = vmax.f32 %v1925, 0.0
          %v2092 = vmax.f32 %v1930, 0.0
          %v2093 = vmax.f32 %v1933, 0.0
          %v2094 = vmax.f32 %v1938, 0.0
          %v2095 = vmax.f32 %v1941, 0.0
          %v2096 = vmax.f32 %v1946, 0.0
          %v2097 = vmax.f32 %v1949, 0.0
          %v2098 = vmax.f32 %v1954, 0.0
          %v2099 = vmax.f32 %v1957, 0.0
          %v2100 = vmax.f32 %v1962, 0.0
          %v2101 = vmax.f32 %v1965, 0.0
          %v2102 = vmax.f32 %v1970, 0.0
          %v2103 = vmax.f32 %v1973, 0.0
          %v2104 = vmax.f32 %v1978, 0.0
          %v2105 = vmax.f32 %v1981, 0.0
          %v2106 = vmax.f32 %v1986, 0.0
          %v2107 = vmax.f32 %v1989, 0.0
          %v2108 = vmax.f32 %v1994, 0.0
          %v2109 = vmax.f32 %v1997, 0.0
          %v2110 = vmax.f32 %v2002, 0.0
          %v2111 = vmax.f32 %v2005, 0.0
          %v2112 = vpack.c.bf16 %v2081, %v2080
          %v2113 = vpack.c.bf16 %v2083, %v2082
          %v2114 = vpack.c.bf16 %v2085, %v2084
          %v2115 = vpack.c.bf16 %v2087, %v2086
          %v2116 = vpack.c.bf16 %v2089, %v2088
          %v2117 = vpack.c.bf16 %v2091, %v2090
          %v2118 = vpack.c.bf16 %v2093, %v2092
          %v2119 = vpack.c.bf16 %v2095, %v2094
          %v2120 = vpack.c.bf16 %v2097, %v2096
          %v2121 = vpack.c.bf16 %v2099, %v2098
          %v2122 = vpack.c.bf16 %v2101, %v2100
          %v2123 = vpack.c.bf16 %v2103, %v2102
          %v2124 = vpack.c.bf16 %v2105, %v2104
          %v2125 = vpack.c.bf16 %v2107, %v2106
          %v2126 = vpack.c.bf16 %v2109, %v2108
          %v2127 = vpack.c.bf16 %v2111, %v2110
          %s2128 = smul.addr %s266, 8
          %s2129 = scalar_lea.vmem [#allocation4], %s2128
          %2130 = vst [vmem:[%s2129] sm:$0xff] %v2112
          %2131 = vst [vmem:[%s2129 + $0x8] sm:$0xff] %v2113
          %2132 = vst [vmem:[%s2129 + $0x10] sm:$0xff] %v2114
          %2133 = vst [vmem:[%s2129 + $0x18] sm:$0xff] %v2115
          %2134 = vst [vmem:[%s2129 + $0x20] sm:$0xff] %v2116
          %2135 = vst [vmem:[%s2129 + $0x28] sm:$0xff] %v2117
          %2136 = vst [vmem:[%s2129 + $0x30] sm:$0xff] %v2118
          %2137 = vst [vmem:[%s2129 + $0x38] sm:$0xff] %v2119
          %2138 = vst [vmem:[%s2129 + $0x40] sm:$0xff] %v2120
          %2139 = vst [vmem:[%s2129 + $0x48] sm:$0xff] %v2121
          %2140 = vst [vmem:[%s2129 + $0x50] sm:$0xff] %v2122
          %2141 = vst [vmem:[%s2129 + $0x58] sm:$0xff] %v2123
          %2142 = vst [vmem:[%s2129 + $0x60] sm:$0xff] %v2124
          %2143 = vst [vmem:[%s2129 + $0x68] sm:$0xff] %v2125
          %2144 = vst [vmem:[%s2129 + $0x70] sm:$0xff] %v2126
          %2145 = vst [vmem:[%s2129 + $0x78] sm:$0xff] %v2127
        $region64: #{_gcn3_forward_fused.1} parent=31 // pred_fallthru
          _
        // Predicated region
        $region65: #{_gcn3_forward_fused.1} parent=31 // pred_check
          %p2146 = pneg %p1338
        $region66: #{_gcn3_forward_fused.1} parent=31 // pred_check_branch
          %2148 = sbr.rel (%p2146) target = $region68
        $region67: #{_gcn3_forward_fused.1} parent=31 // pred_region
          %s2149 = scalar_lea.vmem [#allocation12], %s265
          %2150 = vst [vmem:[%s2149] sm:$0xff] %v1882
          %2151 = vst [vmem:[%s2149 + $0x8] sm:$0xff] %v1885
          %2152 = vst [vmem:[%s2149 + $0x10] sm:$0xff] %v1890
          %2153 = vst [vmem:[%s2149 + $0x18] sm:$0xff] %v1893
          %2154 = vst [vmem:[%s2149 + $0x20] sm:$0xff] %v1898
          %2155 = vst [vmem:[%s2149 + $0x28] sm:$0xff] %v1901
          %2156 = vst [vmem:[%s2149 + $0x30] sm:$0xff] %v1906
          %2157 = vst [vmem:[%s2149 + $0x38] sm:$0xff] %v1909
          %2158 = vst [vmem:[%s2149 + $0x40] sm:$0xff] %v1914
          %2159 = vst [vmem:[%s2149 + $0x48] sm:$0xff] %v1917
          %2160 = vst [vmem:[%s2149 + $0x50] sm:$0xff] %v1922
          %2161 = vst [vmem:[%s2149 + $0x58] sm:$0xff] %v1925
          %2162 = vst [vmem:[%s2149 + $0x60] sm:$0xff] %v1930
          %2163 = vst [vmem:[%s2149 + $0x68] sm:$0xff] %v1933
          %2164 = vst [vmem:[%s2149 + $0x70] sm:$0xff] %v1938
          %2165 = vst [vmem:[%s2149 + $0x78] sm:$0xff] %v1941
          %2166 = vst [vmem:[%s2149 + $0x80] sm:$0xff] %v1946
          %2167 = vst [vmem:[%s2149 + $0x88] sm:$0xff] %v1949
          %2168 = vst [vmem:[%s2149 + $0x90] sm:$0xff] %v1954
          %2169 = vst [vmem:[%s2149 + $0x98] sm:$0xff] %v1957
          %2170 = vst [vmem:[%s2149 + $0xa0] sm:$0xff] %v1962
          %2171 = vst [vmem:[%s2149 + $0xa8] sm:$0xff] %v1965
          %2172 = vst [vmem:[%s2149 + $0xb0] sm:$0xff] %v1970
          %2173 = vst [vmem:[%s2149 + $0xb8] sm:$0xff] %v1973
          %2174 = vst [vmem:[%s2149 + $0xc0] sm:$0xff] %v1978
          %2175 = vst [vmem:[%s2149 + $0xc8] sm:$0xff] %v1981
          %2176 = vst [vmem:[%s2149 + $0xd0] sm:$0xff] %v1986
          %2177 = vst [vmem:[%s2149 + $0xd8] sm:$0xff] %v1989
          %2178 = vst [vmem:[%s2149 + $0xe0] sm:$0xff] %v1994
          %2179 = vst [vmem:[%s2149 + $0xe8] sm:$0xff] %v1997
          %2180 = vst [vmem:[%s2149 + $0xf0] sm:$0xff] %v2002
          %2181 = vst [vmem:[%s2149 + $0xf8] sm:$0xff] %v2005
        $region68: #{_gcn3_forward_fused.1} parent=31 // pred_fallthru
          _
        // Predicated region
        $region69: #{_gcn3_forward_fused.1} parent=31 // pred_check
          %p2182 = pneg %p118
        $region70: #{_gcn3_forward_fused.1} parent=31 // pred_check_branch
          %2184 = sbr.rel (%p2182) target = $region72
        $region71: #{_gcn3_forward_fused.1} parent=31 // pred_region
          %s2186 = ssub.s32 8192, 8192
          %2187 = vsyncadd [#allocation9], %s2186
          %s2188 = sshll.u32 [#allocation12], 4
          %s2189 = int_to_ptr.vmem [resolvable:$true] %s2188
          %2194 = dma.vmem_to_hbm [thread:$0]  %s2189, 8192, %s4, [#allocation9], 128, 128, 8
        $region72: #{_gcn3_forward_fused.1} parent=31 // pred_fallthru
          _
        // Predicated region
        $region73: #{_gcn3_forward_fused.1} parent=31 // pred_check
          %p2195 = pneg %p118
        $region74: #{_gcn3_forward_fused.1} parent=31 // pred_check_branch
          %2197 = sbr.rel (%p2195) target = $region76
        $region75: #{_gcn3_forward_fused.1} parent=31 // pred_region
          %2198 = dma.done [#allocation9], 8192
        $region76: #{_gcn3_forward_fused.1} parent=31 // pred_fallthru
          _
      $region32: #{_gcn3_forward_fused.1} parent=5 // pred_fallthru
        _
      %p2199 = scmp.le.s32.totalorder 2, %s15
      // Predicated region
      $region77: #{_gcn3_forward_fused.1} parent=5 // pred_check
        %p2200 = pneg %p2199
      $region78: #{_gcn3_forward_fused.1} parent=5 // pred_check_branch
        %2202 = sbr.rel (%p2200) target = $region80
      $region79: #{_gcn3_forward_fused.1} parent=5 // pred_region
        %s2203 = ssub.s32 %s15, 2
      $region80: #{_gcn3_forward_fused.1} parent=5 // pred_fallthru
        _
    $region6: #{_gcn3_forward_fused.1} parent=1 // loop_footer
      %s19 = sadd.s32 1, %s15
    $region7: #{_gcn3_forward_fused.1} parent=1 // loop_footer_branch
      %14 = sbr.rel target = $region3
    $region8: #{_gcn3_forward_fused.1} parent=1 // loop_exit
      _
    %2204 = vsyncpa [#allocation8], 1
    %s2205 = scalar_lea.sflag [#allocation8], 1
    %2206 = vsyncpa %s2205, 1
    %2207 = vsyncpa [#allocation11], 1
    %s2208 = scalar_lea.sflag [#allocation11], 1
    %2209 = vsyncpa %s2208, 1
    %2210 = vsyncpa [#allocation9], 1
    %s2211 = scalar_lea.sflag [#allocation9], 1
    %2212 = vsyncpa %s2211, 1
  %2213 = vsyncmov [#allocation6]
  %s2214 = vpop.sfrf %2213
  %p2215 = scmp.eq.s32.totalorder %s2214, 0
  %p2216 = pneg %p2215
  %2218 = shalt.err (%p2216)

</llo_original>
